<compile_context>
chip_gen: v7x
topology: tpu7x:2x2x1
jax: 0.10.0
libtpu: 0.0.40
codegen_flags: <defaults>
</compile_context>

<pallas_src>
import functools

import jax
import jax.numpy as jnp
from jax.experimental import pallas as pl
from jax.experimental.pallas import tpu as pltpu


def _tca_kernel(x_ref, xo_ref, dec_ref, wq_ref, wkv_ref, wp_ref, o_ref,
                *, num_heads, eps):
    """One grid step == BB batch elements. All operands live in VMEM."""
    BB, N, C = x_ref.shape
    D = C // num_heads
    rows = BB * N

    # Activations arrive from HBM already in bf16; weights are bf16 with the
    # attention scale pre-folded into Wq.
    x2 = x_ref[...].reshape(rows, C)                     # (BB*N, C) bf16
    xo2 = xo_ref[...].reshape(rows, C)                   # (BB*N, C) bf16

    # (1 - policy), hoisted out of the head loop; broadcasts over queries.
    fuse = (1.0 - dec_ref[...]).astype(jnp.float32)      # (BB, 1, N)

    # Projections over all BB*N rows at once (fills the MXU M dimension).
    q = jnp.dot(x2, wq_ref[...],
                preferred_element_type=jnp.float32).astype(jnp.bfloat16)
    kv = jnp.dot(xo2, wkv_ref[...],
                 preferred_element_type=jnp.float32).astype(jnp.bfloat16)

    q3 = q.reshape(BB, N, C)                             # pre-scaled (scale in Wq)
    k3 = kv[:, :C].reshape(BB, N, C)
    v3 = kv[:, C:].reshape(BB, N, C)

    # Lane-dense f32 accumulator for the already-projected output
    # (live value: no VMEM scratch, no 16-lane masked partial stores).
    o_acc = jnp.zeros((rows, C), jnp.float32)

    # Per-head policy-masked softmax attention (softmax_with_policy in the
    # PyTorch reference), batched over the BB batch elements.  num_heads is
    # small -> static unroll.
    for h in range(num_heads):
        lo = h * D
        qh = q3[:, :, lo:lo + D]                         # (BB, N, D) bf16
        kh = k3[:, :, lo:lo + D]
        vh = v3[:, :, lo:lo + D]

        # logits / softmax statistics stay in f32 (v5e VPU/EUP have no bf16).
        a = jnp.einsum('bnd,bmd->bnm', qh, kh,
                       preferred_element_type=jnp.float32)           # (BB, N, N)
        m = jnp.max(a, axis=-1, keepdims=True)           # unmasked row max (as torch)
        e = jnp.exp(a - m) * fuse                        # mask applied AFTER exp
        denom = jnp.sum(e, axis=-1, keepdims=True) + eps
        p = (e + eps / N) * pl.reciprocal(denom, approx=True)        # EUP reciprocal

        ctx = jnp.einsum('bnm,bmd->bnd', p.astype(jnp.bfloat16), vh,
                         preferred_element_type=jnp.float32)         # (BB, N, D)

        # Fold the output projection into the head loop: ctx @ Wp[lo:lo+D, :]
        # (16-row bf16 slice is sublane-aligned; accumulation stays lane-dense).
        o_acc = o_acc + jnp.dot(ctx.reshape(rows, D).astype(jnp.bfloat16),
                                wp_ref[lo:lo + D, :],
                                preferred_element_type=jnp.float32)

    o_ref[...] = o_acc.reshape(BB, N, C).astype(o_ref.dtype)


def _choose_block_batch(B, N):
    """Batch elements per grid step.

    Targets ~256 MXU rows per projection matmul (v6e/v7x systolic array; 128
    already saturates v5e) while keeping >= 2 grid steps when B permits so
    dimension_semantics=("parallel",) can shard across v7x's two TensorCores.
    """
    bb = max(1, min(B, 256 // max(N, 1)))
    if B >= 2:
        bb = min(bb, pl.cdiv(B, 2))
    while B % bb:                                        # avoid a ragged last block
        bb -= 1
    return bb


def token_cross_attention(x, x_origin, decisions, wq, wk, wv, wp, *, num_heads):
    B, N, C = x.shape
    assert C % num_heads == 0
    head_dim = C // num_heads
    scale = head_dim ** (-0.5)
    eps = 1e-6
    out_dtype = x.dtype

    BB = _choose_block_batch(B, N)
    grid = (B // BB,)

    # bf16 activations (halves HBM->VMEM DMA bytes); policy kept f32.
    x_b = x.astype(jnp.bfloat16)
    xo_b = x_origin.astype(jnp.bfloat16)
    dec3 = decisions.reshape(B, 1, N).astype(jnp.float32)

    # bf16 weights; attention scale folded into Wq; Wk/Wv fused into one (C, 2C)
    # matmul.  (In a real model these would be prepared once at parameter-setup
    # time, not re-materialized per call.)
    wq_b = (wq * scale).astype(jnp.bfloat16)
    wkv_b = jnp.concatenate([wk, wv], axis=1).astype(jnp.bfloat16)   # (C, 2C)
    wp_b = wp.astype(jnp.bfloat16)

    kernel = functools.partial(_tca_kernel, num_heads=num_heads, eps=eps)

    # VMEM budget from the actual working set (with headroom), clamped to the
    # chip's capacity (v7x has 64 MiB vs 128 MiB on v5e/v6e).
    rows = BB * N
    out_itemsize = jnp.dtype(out_dtype).itemsize
    act_in_bytes = rows * C * 2                          # one bf16 activation tile
    weight_bytes = 4 * C * C * 2                         # Wq + Wkv + Wp, bf16
    work_bytes = (
        2 * 2 * act_in_bytes                             # double-buffered x / x_origin
        + 2 * rows * C * out_itemsize                    # double-buffered output tile
        + 2 * weight_bytes                               # double-buffered weights
        + 3 * rows * C * 4                               # q / kv live values
        + rows * C * 4                                   # o_acc accumulator
        + 3 * BB * N * N * 4                             # per-head logits / probs temps
    )
    try:
        vmem_cap = pltpu.get_tpu_info().vmem_capacity_bytes
    except Exception:                                    # conservative v7x fallback
        vmem_cap = 64 * 1024 * 1024
    vmem_limit = int(min(max(2 * work_bytes, 16 * 1024 * 1024),
                         (3 * vmem_cap) // 4))

    cost = pl.CostEstimate(
        flops=int(B * (8 * N * C * C + 4 * N * N * C)),
        transcendentals=int(B * num_heads * N * N),
        bytes_accessed=int(2 * B * N * C * 2 + B * N * C * out_itemsize
                           + B * N * 4 + weight_bytes),
    )

    return pl.pallas_call(
        kernel,
        out_shape=jax.ShapeDtypeStruct((B, N, C), out_dtype),
        grid_spec=pltpu.PrefetchScalarGridSpec(
            num_scalar_prefetch=0,
            grid=grid,
            in_specs=[
                pl.BlockSpec((BB, N, C), lambda b: (b, 0, 0)),   # x        (bf16)
                pl.BlockSpec((BB, N, C), lambda b: (b, 0, 0)),   # x_origin (bf16)
                pl.BlockSpec((BB, 1, N), lambda b: (b, 0, 0)),   # decisions
                # TODO(synk): at large C mark the three weight specs with
                # pipeline_mode=pl.Buffered(1) (constant index_map) to drop
                # their double buffers; irrelevant at C=128.
                pl.BlockSpec((C, C), lambda b: (0, 0)),          # Wq*scale (bf16)
                pl.BlockSpec((C, 2 * C), lambda b: (0, 0)),      # Wk|Wv    (bf16)
                pl.BlockSpec((C, C), lambda b: (0, 0)),          # Wproj    (bf16)
            ],
            out_specs=pl.BlockSpec((BB, N, C), lambda b: (b, 0, 0)),
        ),
        compiler_params=pltpu.CompilerParams(
            dimension_semantics=("parallel",),
            vmem_limit_bytes=vmem_limit,
        ),
        cost_estimate=cost,
    )(x_b, xo_b, dec3, wq_b, wkv_b, wp_b)


def reference(x, x_origin, decisions, wq, wk, wv, wp, num_heads):
    """Pure-JAX (f32) port of the PyTorch forward, for correctness checking."""
    B, N, C = x.shape
    D = C // num_heads
    scale = D ** (-0.5)
    eps = 1e-6
    q = (x @ wq).reshape(B, N, num_heads, D).transpose(0, 2, 1, 3)
    k = (x_origin @ wk).reshape(B, N, num_heads, D).transpose(0, 2, 1, 3)
    v = (x_origin @ wv).reshape(B, N, num_heads, D).transpose(0, 2, 1, 3)
    attn = jnp.einsum('bhnd,bhmd->bhnm', q, k) * scale
    fuse = (1.0 - decisions)[:, None, None, :]                    # (B,1,1,N)
    m = jnp.max(attn, axis=-1, keepdims=True)
    e = jnp.exp(attn - m) * fuse
    attn = (e + eps / N) / (jnp.sum(e, axis=-1, keepdims=True) + eps)
    out = jnp.einsum('bhnm,bhmd->bhnd', attn, v).transpose(0, 2, 1, 3).reshape(B, N, C)
    return out @ wp


if __name__ == "__main__":
    B, N, C, num_heads = 2, 16, 128, 8

    key = jax.random.PRNGKey(0)
    kx, kxo, kd, kq, kk, kv, kp = jax.random.split(key, 7)

    x = jax.random.normal(kx, (B, N, C), dtype=jnp.float32)
    x_origin = jax.random.normal(kxo, (B, N, C), dtype=jnp.float32)
    # binary keep/fuse policy, as produced upstream of this module
    decisions = jax.random.bernoulli(kd, p=0.5, shape=(B, N)).astype(jnp.float32)

    # deterministic synthetic weights; stored as (C_in, C_out) == PyTorch weight.T
    wq = 0.02 * jax.random.normal(kq, (C, C), dtype=jnp.float32)
    wk = 0.02 * jax.random.normal(kk, (C, C), dtype=jnp.float32)
    wv = 0.02 * jax.random.normal(kv, (C, C), dtype=jnp.float32)
    wp = 0.02 * jax.random.normal(kp, (C, C), dtype=jnp.float32)

    out = token_cross_attention(x, x_origin, decisions, wq, wk, wv, wp,
                                num_heads=num_heads)
    out = jax.block_until_ready(out)

    ref = reference(x, x_origin, decisions, wq, wk, wv, wp, num_heads)
    assert out.shape == (B, N, C)
    # bf16 MXU operands + approx reciprocal vs. pure-f32 reference -> loose tolerance.
    assert jnp.allclose(out, ref, rtol=5e-2, atol=5e-3), "mismatch vs reference"

    print("KERNEL_OK")
</pallas_src>

<mosaic_0001>
module attributes {stable_mosaic.version = 11 : i64} {
  func.func @_tca_kernel(%arg0: i32, %arg1: memref<1x16x128xbf16, #tpu.memory_space<vmem>>, %arg2: memref<1x16x128xbf16, #tpu.memory_space<vmem>>, %arg3: memref<1x1x16xf32, #tpu.memory_space<vmem>>, %arg4: memref<128x128xbf16, #tpu.memory_space<vmem>>, %arg5: memref<128x256xbf16, #tpu.memory_space<vmem>>, %arg6: memref<128x128xbf16, #tpu.memory_space<vmem>>, %arg7: memref<1x16x128xf32, #tpu.memory_space<vmem>>) attributes {dimension_semantics = [#tpu.dimension_semantics<parallel>], iteration_bounds = array<i64: 2>, scalar_prefetch = 0 : i64, scratch_operands = 0 : i64, tpu.core_type = #tpu.core_type<tc>, window_params = [{transform_indices = @transform_0, window_bounds = array<i64: 1, 16, 128>}, {transform_indices = @transform_1, window_bounds = array<i64: 1, 16, 128>}, {transform_indices = @transform_2, window_bounds = array<i64: 1, 1, 16>}, {pipeline_mode = #tpu.pipeline_mode<synchronous>, transform_indices = @transform_3, window_bounds = array<i64: 128, 128>}, {pipeline_mode = #tpu.pipeline_mode<synchronous>, transform_indices = @transform_4, window_bounds = array<i64: 128, 256>}, {pipeline_mode = #tpu.pipeline_mode<synchronous>, transform_indices = @transform_5, window_bounds = array<i64: 128, 128>}, {transform_indices = @transform_6, window_bounds = array<i64: 1, 16, 128>}]} {
    %c0 = arith.constant 0 : index
    %c0_0 = arith.constant 0 : index
    %c0_1 = arith.constant 0 : index
    %0 = vector.load %arg1[%c0, %c0_0, %c0_1] : memref<1x16x128xbf16, #tpu.memory_space<vmem>>, vector<1x16x128xbf16>
    %1 = vector.shape_cast %0 : vector<1x16x128xbf16> to vector<16x128xbf16>
    %c0_2 = arith.constant 0 : index
    %c0_3 = arith.constant 0 : index
    %c0_4 = arith.constant 0 : index
    %2 = vector.load %arg2[%c0_2, %c0_3, %c0_4] : memref<1x16x128xbf16, #tpu.memory_space<vmem>>, vector<1x16x128xbf16>
    %3 = vector.shape_cast %2 : vector<1x16x128xbf16> to vector<16x128xbf16>
    %c0_5 = arith.constant 0 : index
    %c0_6 = arith.constant 0 : index
    %c0_7 = arith.constant 0 : index
    %4 = vector.load %arg3[%c0_5, %c0_6, %c0_7] : memref<1x1x16xf32, #tpu.memory_space<vmem>>, vector<1x1x16xf32>
    %cst = arith.constant 1.000000e+00 : f32
    %5 = vector.broadcast %cst : f32 to vector<1x1x16xf32>
    %6 = arith.subf %5, %4 : vector<1x1x16xf32>
    %c0_8 = arith.constant 0 : index
    %c0_9 = arith.constant 0 : index
    %7 = vector.load %arg4[%c0_8, %c0_9] : memref<128x128xbf16, #tpu.memory_space<vmem>>, vector<128x128xbf16>
    %cst_10 = arith.constant dense<0.000000e+00> : vector<16x128xf32>
    %8 = tpu.matmul %1, %7, %cst_10 {dimension_numbers = #tpu.dot_dimension_numbers<[1], [0], [0], [1], [0, 0, 1, 1], [], []>} : vector<16x128xbf16>, vector<128x128xbf16>, vector<16x128xf32> -> vector<16x128xf32>
    %9 = arith.truncf %8 : vector<16x128xf32> to vector<16x128xbf16>
    %c0_11 = arith.constant 0 : index
    %c0_12 = arith.constant 0 : index
    %10 = vector.load %arg5[%c0_11, %c0_12] : memref<128x256xbf16, #tpu.memory_space<vmem>>, vector<128x256xbf16>
    %cst_13 = arith.constant dense<0.000000e+00> : vector<16x256xf32>
    %11 = tpu.matmul %3, %10, %cst_13 {dimension_numbers = #tpu.dot_dimension_numbers<[1], [0], [0], [1], [0, 0, 1, 1], [], []>} : vector<16x128xbf16>, vector<128x256xbf16>, vector<16x256xf32> -> vector<16x256xf32>
    %12 = arith.truncf %11 : vector<16x256xf32> to vector<16x256xbf16>
    %13 = vector.shape_cast %9 : vector<16x128xbf16> to vector<1x16x128xbf16>
    %14 = vector.extract_strided_slice %12 {offsets = [0, 0], sizes = [16, 128], strides = [1, 1]} : vector<16x256xbf16> to vector<16x128xbf16>
    %15 = vector.shape_cast %14 : vector<16x128xbf16> to vector<1x16x128xbf16>
    %16 = vector.extract_strided_slice %12 {offsets = [0, 128], sizes = [16, 128], strides = [1, 1]} : vector<16x256xbf16> to vector<16x128xbf16>
    %17 = vector.shape_cast %16 : vector<16x128xbf16> to vector<1x16x128xbf16>
    %cst_14 = arith.constant 0.000000e+00 : f32
    %18 = vector.broadcast %cst_14 : f32 to vector<16x128xf32>
    %19 = vector.extract_strided_slice %13 {offsets = [0, 0, 0], sizes = [1, 16, 16], strides = [1, 1, 1]} : vector<1x16x128xbf16> to vector<1x16x16xbf16>
    %20 = vector.extract_strided_slice %15 {offsets = [0, 0, 0], sizes = [1, 16, 16], strides = [1, 1, 1]} : vector<1x16x128xbf16> to vector<1x16x16xbf16>
    %21 = vector.extract_strided_slice %17 {offsets = [0, 0, 0], sizes = [1, 16, 16], strides = [1, 1, 1]} : vector<1x16x128xbf16> to vector<1x16x16xbf16>
    "tpu.trace_start"() <{level = 10 : i32, message = "bnd,bmd->bnm"}> : () -> ()
    %cst_15 = arith.constant dense<0.000000e+00> : vector<1x16x16xf32>
    %22 = tpu.matmul %19, %20, %cst_15 {dimension_numbers = #tpu.dot_dimension_numbers<[2], [2], [1], [1], [0, 0, 0, 1, 1, 1], [0], [0]>} : vector<1x16x16xbf16>, vector<1x16x16xbf16>, vector<1x16x16xf32> -> vector<1x16x16xf32>
    "tpu.trace_stop"() : () -> ()
    %cst_16 = arith.constant dense<0xFF800000> : vector<1x16xf32>
    %23 = vector.multi_reduction <maximumf>, %22, %cst_16 [2] : vector<1x16x16xf32> to vector<1x16xf32>
    %24 = vector.shape_cast %23 : vector<1x16xf32> to vector<1x16x1xf32>
    %25 = vector.broadcast %24 : vector<1x16x1xf32> to vector<1x16x16xf32>
    %26 = arith.subf %22, %25 : vector<1x16x16xf32>
    %27 = math.exp %26 : vector<1x16x16xf32>
    %28 = vector.broadcast %6 : vector<1x1x16xf32> to vector<1x16x16xf32>
    %29 = arith.mulf %27, %28 : vector<1x16x16xf32>
    %cst_17 = arith.constant dense<0.000000e+00> : vector<1x16xf32>
    %30 = vector.multi_reduction <add>, %29, %cst_17 [2] : vector<1x16x16xf32> to vector<1x16xf32>
    %31 = vector.shape_cast %30 : vector<1x16xf32> to vector<1x16x1xf32>
    %cst_18 = arith.constant 9.99999997E-7 : f32
    %32 = vector.broadcast %cst_18 : f32 to vector<1x16x1xf32>
    %33 = arith.addf %31, %32 : vector<1x16x1xf32>
    %cst_19 = arith.constant 6.24999998E-8 : f32
    %34 = vector.broadcast %cst_19 : f32 to vector<1x16x16xf32>
    %35 = arith.addf %29, %34 : vector<1x16x16xf32>
    %36 = tpu.reciprocal %33 {approx = true} : vector<1x16x1xf32> -> vector<1x16x1xf32>
    %37 = vector.broadcast %36 : vector<1x16x1xf32> to vector<1x16x16xf32>
    %38 = arith.mulf %35, %37 : vector<1x16x16xf32>
    %39 = arith.truncf %38 : vector<1x16x16xf32> to vector<1x16x16xbf16>
    "tpu.trace_start"() <{level = 10 : i32, message = "bnm,bmd->bnd"}> : () -> ()
    %cst_20 = arith.constant dense<0.000000e+00> : vector<1x16x16xf32>
    %40 = tpu.matmul %39, %21, %cst_20 {dimension_numbers = #tpu.dot_dimension_numbers<[2], [1], [1], [2], [0, 0, 0, 1, 1, 2], [0], [0]>} : vector<1x16x16xbf16>, vector<1x16x16xbf16>, vector<1x16x16xf32> -> vector<1x16x16xf32>
    "tpu.trace_stop"() : () -> ()
    %41 = vector.shape_cast %40 : vector<1x16x16xf32> to vector<16x16xf32>
    %42 = arith.truncf %41 : vector<16x16xf32> to vector<16x16xbf16>
    %c0_21 = arith.constant 0 : index
    %c0_22 = arith.constant 0 : index
    %43 = vector.load %arg6[%c0_21, %c0_22] : memref<128x128xbf16, #tpu.memory_space<vmem>>, vector<16x128xbf16>
    %cst_23 = arith.constant dense<0.000000e+00> : vector<16x128xf32>
    %44 = tpu.matmul %42, %43, %cst_23 {dimension_numbers = #tpu.dot_dimension_numbers<[1], [0], [0], [1], [0, 0, 1, 1], [], []>} : vector<16x16xbf16>, vector<16x128xbf16>, vector<16x128xf32> -> vector<16x128xf32>
    %45 = arith.addf %18, %44 : vector<16x128xf32>
    %46 = vector.extract_strided_slice %13 {offsets = [0, 0, 16], sizes = [1, 16, 16], strides = [1, 1, 1]} : vector<1x16x128xbf16> to vector<1x16x16xbf16>
    %47 = vector.extract_strided_slice %15 {offsets = [0, 0, 16], sizes = [1, 16, 16], strides = [1, 1, 1]} : vector<1x16x128xbf16> to vector<1x16x16xbf16>
    %48 = vector.extract_strided_slice %17 {offsets = [0, 0, 16], sizes = [1, 16, 16], strides = [1, 1, 1]} : vector<1x16x128xbf16> to vector<1x16x16xbf16>
    "tpu.trace_start"() <{level = 10 : i32, message = "bnd,bmd->bnm"}> : () -> ()
    %cst_24 = arith.constant dense<0.000000e+00> : vector<1x16x16xf32>
    %49 = tpu.matmul %46, %47, %cst_24 {dimension_numbers = #tpu.dot_dimension_numbers<[2], [2], [1], [1], [0, 0, 0, 1, 1, 1], [0], [0]>} : vector<1x16x16xbf16>, vector<1x16x16xbf16>, vector<1x16x16xf32> -> vector<1x16x16xf32>
    "tpu.trace_stop"() : () -> ()
    %cst_25 = arith.constant dense<0xFF800000> : vector<1x16xf32>
    %50 = vector.multi_reduction <maximumf>, %49, %cst_25 [2] : vector<1x16x16xf32> to vector<1x16xf32>
    %51 = vector.shape_cast %50 : vector<1x16xf32> to vector<1x16x1xf32>
    %52 = vector.broadcast %51 : vector<1x16x1xf32> to vector<1x16x16xf32>
    %53 = arith.subf %49, %52 : vector<1x16x16xf32>
    %54 = math.exp %53 : vector<1x16x16xf32>
    %55 = vector.broadcast %6 : vector<1x1x16xf32> to vector<1x16x16xf32>
    %56 = arith.mulf %54, %55 : vector<1x16x16xf32>
    %cst_26 = arith.constant dense<0.000000e+00> : vector<1x16xf32>
    %57 = vector.multi_reduction <add>, %56, %cst_26 [2] : vector<1x16x16xf32> to vector<1x16xf32>
    %58 = vector.shape_cast %57 : vector<1x16xf32> to vector<1x16x1xf32>
    %cst_27 = arith.constant 9.99999997E-7 : f32
    %59 = vector.broadcast %cst_27 : f32 to vector<1x16x1xf32>
    %60 = arith.addf %58, %59 : vector<1x16x1xf32>
    %cst_28 = arith.constant 6.24999998E-8 : f32
    %61 = vector.broadcast %cst_28 : f32 to vector<1x16x16xf32>
    %62 = arith.addf %56, %61 : vector<1x16x16xf32>
    %63 = tpu.reciprocal %60 {approx = true} : vector<1x16x1xf32> -> vector<1x16x1xf32>
    %64 = vector.broadcast %63 : vector<1x16x1xf32> to vector<1x16x16xf32>
    %65 = arith.mulf %62, %64 : vector<1x16x16xf32>
    %66 = arith.truncf %65 : vector<1x16x16xf32> to vector<1x16x16xbf16>
    "tpu.trace_start"() <{level = 10 : i32, message = "bnm,bmd->bnd"}> : () -> ()
    %cst_29 = arith.constant dense<0.000000e+00> : vector<1x16x16xf32>
    %67 = tpu.matmul %66, %48, %cst_29 {dimension_numbers = #tpu.dot_dimension_numbers<[2], [1], [1], [2], [0, 0, 0, 1, 1, 2], [0], [0]>} : vector<1x16x16xbf16>, vector<1x16x16xbf16>, vector<1x16x16xf32> -> vector<1x16x16xf32>
    "tpu.trace_stop"() : () -> ()
    %68 = vector.shape_cast %67 : vector<1x16x16xf32> to vector<16x16xf32>
    %69 = arith.truncf %68 : vector<16x16xf32> to vector<16x16xbf16>
    %c16 = arith.constant 16 : index
    %c0_30 = arith.constant 0 : index
    %70 = vector.load %arg6[%c16, %c0_30] : memref<128x128xbf16, #tpu.memory_space<vmem>>, vector<16x128xbf16>
    %cst_31 = arith.constant dense<0.000000e+00> : vector<16x128xf32>
    %71 = tpu.matmul %69, %70, %cst_31 {dimension_numbers = #tpu.dot_dimension_numbers<[1], [0], [0], [1], [0, 0, 1, 1], [], []>} : vector<16x16xbf16>, vector<16x128xbf16>, vector<16x128xf32> -> vector<16x128xf32>
    %72 = arith.addf %45, %71 : vector<16x128xf32>
    %73 = vector.extract_strided_slice %13 {offsets = [0, 0, 32], sizes = [1, 16, 16], strides = [1, 1, 1]} : vector<1x16x128xbf16> to vector<1x16x16xbf16>
    %74 = vector.extract_strided_slice %15 {offsets = [0, 0, 32], sizes = [1, 16, 16], strides = [1, 1, 1]} : vector<1x16x128xbf16> to vector<1x16x16xbf16>
    %75 = vector.extract_strided_slice %17 {offsets = [0, 0, 32], sizes = [1, 16, 16], strides = [1, 1, 1]} : vector<1x16x128xbf16> to vector<1x16x16xbf16>
    "tpu.trace_start"() <{level = 10 : i32, message = "bnd,bmd->bnm"}> : () -> ()
    %cst_32 = arith.constant dense<0.000000e+00> : vector<1x16x16xf32>
    %76 = tpu.matmul %73, %74, %cst_32 {dimension_numbers = #tpu.dot_dimension_numbers<[2], [2], [1], [1], [0, 0, 0, 1, 1, 1], [0], [0]>} : vector<1x16x16xbf16>, vector<1x16x16xbf16>, vector<1x16x16xf32> -> vector<1x16x16xf32>
    "tpu.trace_stop"() : () -> ()
    %cst_33 = arith.constant dense<0xFF800000> : vector<1x16xf32>
    %77 = vector.multi_reduction <maximumf>, %76, %cst_33 [2] : vector<1x16x16xf32> to vector<1x16xf32>
    %78 = vector.shape_cast %77 : vector<1x16xf32> to vector<1x16x1xf32>
    %79 = vector.broadcast %78 : vector<1x16x1xf32> to vector<1x16x16xf32>
    %80 = arith.subf %76, %79 : vector<1x16x16xf32>
    %81 = math.exp %80 : vector<1x16x16xf32>
    %82 = vector.broadcast %6 : vector<1x1x16xf32> to vector<1x16x16xf32>
    %83 = arith.mulf %81, %82 : vector<1x16x16xf32>
    %cst_34 = arith.constant dense<0.000000e+00> : vector<1x16xf32>
    %84 = vector.multi_reduction <add>, %83, %cst_34 [2] : vector<1x16x16xf32> to vector<1x16xf32>
    %85 = vector.shape_cast %84 : vector<1x16xf32> to vector<1x16x1xf32>
    %cst_35 = arith.constant 9.99999997E-7 : f32
    %86 = vector.broadcast %cst_35 : f32 to vector<1x16x1xf32>
    %87 = arith.addf %85, %86 : vector<1x16x1xf32>
    %cst_36 = arith.constant 6.24999998E-8 : f32
    %88 = vector.broadcast %cst_36 : f32 to vector<1x16x16xf32>
    %89 = arith.addf %83, %88 : vector<1x16x16xf32>
    %90 = tpu.reciprocal %87 {approx = true} : vector<1x16x1xf32> -> vector<1x16x1xf32>
    %91 = vector.broadcast %90 : vector<1x16x1xf32> to vector<1x16x16xf32>
    %92 = arith.mulf %89, %91 : vector<1x16x16xf32>
    %93 = arith.truncf %92 : vector<1x16x16xf32> to vector<1x16x16xbf16>
    "tpu.trace_start"() <{level = 10 : i32, message = "bnm,bmd->bnd"}> : () -> ()
    %cst_37 = arith.constant dense<0.000000e+00> : vector<1x16x16xf32>
    %94 = tpu.matmul %93, %75, %cst_37 {dimension_numbers = #tpu.dot_dimension_numbers<[2], [1], [1], [2], [0, 0, 0, 1, 1, 2], [0], [0]>} : vector<1x16x16xbf16>, vector<1x16x16xbf16>, vector<1x16x16xf32> -> vector<1x16x16xf32>
    "tpu.trace_stop"() : () -> ()
    %95 = vector.shape_cast %94 : vector<1x16x16xf32> to vector<16x16xf32>
    %96 = arith.truncf %95 : vector<16x16xf32> to vector<16x16xbf16>
    %c32 = arith.constant 32 : index
    %c0_38 = arith.constant 0 : index
    %97 = vector.load %arg6[%c32, %c0_38] : memref<128x128xbf16, #tpu.memory_space<vmem>>, vector<16x128xbf16>
    %cst_39 = arith.constant dense<0.000000e+00> : vector<16x128xf32>
    %98 = tpu.matmul %96, %97, %cst_39 {dimension_numbers = #tpu.dot_dimension_numbers<[1], [0], [0], [1], [0, 0, 1, 1], [], []>} : vector<16x16xbf16>, vector<16x128xbf16>, vector<16x128xf32> -> vector<16x128xf32>
    %99 = arith.addf %72, %98 : vector<16x128xf32>
    %100 = vector.extract_strided_slice %13 {offsets = [0, 0, 48], sizes = [1, 16, 16], strides = [1, 1, 1]} : vector<1x16x128xbf16> to vector<1x16x16xbf16>
    %101 = vector.extract_strided_slice %15 {offsets = [0, 0, 48], sizes = [1, 16, 16], strides = [1, 1, 1]} : vector<1x16x128xbf16> to vector<1x16x16xbf16>
    %102 = vector.extract_strided_slice %17 {offsets = [0, 0, 48], sizes = [1, 16, 16], strides = [1, 1, 1]} : vector<1x16x128xbf16> to vector<1x16x16xbf16>
    "tpu.trace_start"() <{level = 10 : i32, message = "bnd,bmd->bnm"}> : () -> ()
    %cst_40 = arith.constant dense<0.000000e+00> : vector<1x16x16xf32>
    %103 = tpu.matmul %100, %101, %cst_40 {dimension_numbers = #tpu.dot_dimension_numbers<[2], [2], [1], [1], [0, 0, 0, 1, 1, 1], [0], [0]>} : vector<1x16x16xbf16>, vector<1x16x16xbf16>, vector<1x16x16xf32> -> vector<1x16x16xf32>
    "tpu.trace_stop"() : () -> ()
    %cst_41 = arith.constant dense<0xFF800000> : vector<1x16xf32>
    %104 = vector.multi_reduction <maximumf>, %103, %cst_41 [2] : vector<1x16x16xf32> to vector<1x16xf32>
    %105 = vector.shape_cast %104 : vector<1x16xf32> to vector<1x16x1xf32>
    %106 = vector.broadcast %105 : vector<1x16x1xf32> to vector<1x16x16xf32>
    %107 = arith.subf %103, %106 : vector<1x16x16xf32>
    %108 = math.exp %107 : vector<1x16x16xf32>
    %109 = vector.broadcast %6 : vector<1x1x16xf32> to vector<1x16x16xf32>
    %110 = arith.mulf %108, %109 : vector<1x16x16xf32>
    %cst_42 = arith.constant dense<0.000000e+00> : vector<1x16xf32>
    %111 = vector.multi_reduction <add>, %110, %cst_42 [2] : vector<1x16x16xf32> to vector<1x16xf32>
    %112 = vector.shape_cast %111 : vector<1x16xf32> to vector<1x16x1xf32>
    %cst_43 = arith.constant 9.99999997E-7 : f32
    %113 = vector.broadcast %cst_43 : f32 to vector<1x16x1xf32>
    %114 = arith.addf %112, %113 : vector<1x16x1xf32>
    %cst_44 = arith.constant 6.24999998E-8 : f32
    %115 = vector.broadcast %cst_44 : f32 to vector<1x16x16xf32>
    %116 = arith.addf %110, %115 : vector<1x16x16xf32>
    %117 = tpu.reciprocal %114 {approx = true} : vector<1x16x1xf32> -> vector<1x16x1xf32>
    %118 = vector.broadcast %117 : vector<1x16x1xf32> to vector<1x16x16xf32>
    %119 = arith.mulf %116, %118 : vector<1x16x16xf32>
    %120 = arith.truncf %119 : vector<1x16x16xf32> to vector<1x16x16xbf16>
    "tpu.trace_start"() <{level = 10 : i32, message = "bnm,bmd->bnd"}> : () -> ()
    %cst_45 = arith.constant dense<0.000000e+00> : vector<1x16x16xf32>
    %121 = tpu.matmul %120, %102, %cst_45 {dimension_numbers = #tpu.dot_dimension_numbers<[2], [1], [1], [2], [0, 0, 0, 1, 1, 2], [0], [0]>} : vector<1x16x16xbf16>, vector<1x16x16xbf16>, vector<1x16x16xf32> -> vector<1x16x16xf32>
    "tpu.trace_stop"() : () -> ()
    %122 = vector.shape_cast %121 : vector<1x16x16xf32> to vector<16x16xf32>
    %123 = arith.truncf %122 : vector<16x16xf32> to vector<16x16xbf16>
    %c48 = arith.constant 48 : index
    %c0_46 = arith.constant 0 : index
    %124 = vector.load %arg6[%c48, %c0_46] : memref<128x128xbf16, #tpu.memory_space<vmem>>, vector<16x128xbf16>
    %cst_47 = arith.constant dense<0.000000e+00> : vector<16x128xf32>
    %125 = tpu.matmul %123, %124, %cst_47 {dimension_numbers = #tpu.dot_dimension_numbers<[1], [0], [0], [1], [0, 0, 1, 1], [], []>} : vector<16x16xbf16>, vector<16x128xbf16>, vector<16x128xf32> -> vector<16x128xf32>
    %126 = arith.addf %99, %125 : vector<16x128xf32>
    %127 = vector.extract_strided_slice %13 {offsets = [0, 0, 64], sizes = [1, 16, 16], strides = [1, 1, 1]} : vector<1x16x128xbf16> to vector<1x16x16xbf16>
    %128 = vector.extract_strided_slice %15 {offsets = [0, 0, 64], sizes = [1, 16, 16], strides = [1, 1, 1]} : vector<1x16x128xbf16> to vector<1x16x16xbf16>
    %129 = vector.extract_strided_slice %17 {offsets = [0, 0, 64], sizes = [1, 16, 16], strides = [1, 1, 1]} : vector<1x16x128xbf16> to vector<1x16x16xbf16>
    "tpu.trace_start"() <{level = 10 : i32, message = "bnd,bmd->bnm"}> : () -> ()
    %cst_48 = arith.constant dense<0.000000e+00> : vector<1x16x16xf32>
    %130 = tpu.matmul %127, %128, %cst_48 {dimension_numbers = #tpu.dot_dimension_numbers<[2], [2], [1], [1], [0, 0, 0, 1, 1, 1], [0], [0]>} : vector<1x16x16xbf16>, vector<1x16x16xbf16>, vector<1x16x16xf32> -> vector<1x16x16xf32>
    "tpu.trace_stop"() : () -> ()
    %cst_49 = arith.constant dense<0xFF800000> : vector<1x16xf32>
    %131 = vector.multi_reduction <maximumf>, %130, %cst_49 [2] : vector<1x16x16xf32> to vector<1x16xf32>
    %132 = vector.shape_cast %131 : vector<1x16xf32> to vector<1x16x1xf32>
    %133 = vector.broadcast %132 : vector<1x16x1xf32> to vector<1x16x16xf32>
    %134 = arith.subf %130, %133 : vector<1x16x16xf32>
    %135 = math.exp %134 : vector<1x16x16xf32>
    %136 = vector.broadcast %6 : vector<1x1x16xf32> to vector<1x16x16xf32>
    %137 = arith.mulf %135, %136 : vector<1x16x16xf32>
    %cst_50 = arith.constant dense<0.000000e+00> : vector<1x16xf32>
    %138 = vector.multi_reduction <add>, %137, %cst_50 [2] : vector<1x16x16xf32> to vector<1x16xf32>
    %139 = vector.shape_cast %138 : vector<1x16xf32> to vector<1x16x1xf32>
    %cst_51 = arith.constant 9.99999997E-7 : f32
    %140 = vector.broadcast %cst_51 : f32 to vector<1x16x1xf32>
    %141 = arith.addf %139, %140 : vector<1x16x1xf32>
    %cst_52 = arith.constant 6.24999998E-8 : f32
    %142 = vector.broadcast %cst_52 : f32 to vector<1x16x16xf32>
    %143 = arith.addf %137, %142 : vector<1x16x16xf32>
    %144 = tpu.reciprocal %141 {approx = true} : vector<1x16x1xf32> -> vector<1x16x1xf32>
    %145 = vector.broadcast %144 : vector<1x16x1xf32> to vector<1x16x16xf32>
    %146 = arith.mulf %143, %145 : vector<1x16x16xf32>
    %147 = arith.truncf %146 : vector<1x16x16xf32> to vector<1x16x16xbf16>
    "tpu.trace_start"() <{level = 10 : i32, message = "bnm,bmd->bnd"}> : () -> ()
    %cst_53 = arith.constant dense<0.000000e+00> : vector<1x16x16xf32>
    %148 = tpu.matmul %147, %129, %cst_53 {dimension_numbers = #tpu.dot_dimension_numbers<[2], [1], [1], [2], [0, 0, 0, 1, 1, 2], [0], [0]>} : vector<1x16x16xbf16>, vector<1x16x16xbf16>, vector<1x16x16xf32> -> vector<1x16x16xf32>
    "tpu.trace_stop"() : () -> ()
    %149 = vector.shape_cast %148 : vector<1x16x16xf32> to vector<16x16xf32>
    %150 = arith.truncf %149 : vector<16x16xf32> to vector<16x16xbf16>
    %c64 = arith.constant 64 : index
    %c0_54 = arith.constant 0 : index
    %151 = vector.load %arg6[%c64, %c0_54] : memref<128x128xbf16, #tpu.memory_space<vmem>>, vector<16x128xbf16>
    %cst_55 = arith.constant dense<0.000000e+00> : vector<16x128xf32>
    %152 = tpu.matmul %150, %151, %cst_55 {dimension_numbers = #tpu.dot_dimension_numbers<[1], [0], [0], [1], [0, 0, 1, 1], [], []>} : vector<16x16xbf16>, vector<16x128xbf16>, vector<16x128xf32> -> vector<16x128xf32>
    %153 = arith.addf %126, %152 : vector<16x128xf32>
    %154 = vector.extract_strided_slice %13 {offsets = [0, 0, 80], sizes = [1, 16, 16], strides = [1, 1, 1]} : vector<1x16x128xbf16> to vector<1x16x16xbf16>
    %155 = vector.extract_strided_slice %15 {offsets = [0, 0, 80], sizes = [1, 16, 16], strides = [1, 1, 1]} : vector<1x16x128xbf16> to vector<1x16x16xbf16>
    %156 = vector.extract_strided_slice %17 {offsets = [0, 0, 80], sizes = [1, 16, 16], strides = [1, 1, 1]} : vector<1x16x128xbf16> to vector<1x16x16xbf16>
    "tpu.trace_start"() <{level = 10 : i32, message = "bnd,bmd->bnm"}> : () -> ()
    %cst_56 = arith.constant dense<0.000000e+00> : vector<1x16x16xf32>
    %157 = tpu.matmul %154, %155, %cst_56 {dimension_numbers = #tpu.dot_dimension_numbers<[2], [2], [1], [1], [0, 0, 0, 1, 1, 1], [0], [0]>} : vector<1x16x16xbf16>, vector<1x16x16xbf16>, vector<1x16x16xf32> -> vector<1x16x16xf32>
    "tpu.trace_stop"() : () -> ()
    %cst_57 = arith.constant dense<0xFF800000> : vector<1x16xf32>
    %158 = vector.multi_reduction <maximumf>, %157, %cst_57 [2] : vector<1x16x16xf32> to vector<1x16xf32>
    %159 = vector.shape_cast %158 : vector<1x16xf32> to vector<1x16x1xf32>
    %160 = vector.broadcast %159 : vector<1x16x1xf32> to vector<1x16x16xf32>
    %161 = arith.subf %157, %160 : vector<1x16x16xf32>
    %162 = math.exp %161 : vector<1x16x16xf32>
    %163 = vector.broadcast %6 : vector<1x1x16xf32> to vector<1x16x16xf32>
    %164 = arith.mulf %162, %163 : vector<1x16x16xf32>
    %cst_58 = arith.constant dense<0.000000e+00> : vector<1x16xf32>
    %165 = vector.multi_reduction <add>, %164, %cst_58 [2] : vector<1x16x16xf32> to vector<1x16xf32>
    %166 = vector.shape_cast %165 : vector<1x16xf32> to vector<1x16x1xf32>
    %cst_59 = arith.constant 9.99999997E-7 : f32
    %167 = vector.broadcast %cst_59 : f32 to vector<1x16x1xf32>
    %168 = arith.addf %166, %167 : vector<1x16x1xf32>
    %cst_60 = arith.constant 6.24999998E-8 : f32
    %169 = vector.broadcast %cst_60 : f32 to vector<1x16x16xf32>
    %170 = arith.addf %164, %169 : vector<1x16x16xf32>
    %171 = tpu.reciprocal %168 {approx = true} : vector<1x16x1xf32> -> vector<1x16x1xf32>
    %172 = vector.broadcast %171 : vector<1x16x1xf32> to vector<1x16x16xf32>
    %173 = arith.mulf %170, %172 : vector<1x16x16xf32>
    %174 = arith.truncf %173 : vector<1x16x16xf32> to vector<1x16x16xbf16>
    "tpu.trace_start"() <{level = 10 : i32, message = "bnm,bmd->bnd"}> : () -> ()
    %cst_61 = arith.constant dense<0.000000e+00> : vector<1x16x16xf32>
    %175 = tpu.matmul %174, %156, %cst_61 {dimension_numbers = #tpu.dot_dimension_numbers<[2], [1], [1], [2], [0, 0, 0, 1, 1, 2], [0], [0]>} : vector<1x16x16xbf16>, vector<1x16x16xbf16>, vector<1x16x16xf32> -> vector<1x16x16xf32>
    "tpu.trace_stop"() : () -> ()
    %176 = vector.shape_cast %175 : vector<1x16x16xf32> to vector<16x16xf32>
    %177 = arith.truncf %176 : vector<16x16xf32> to vector<16x16xbf16>
    %c80 = arith.constant 80 : index
    %c0_62 = arith.constant 0 : index
    %178 = vector.load %arg6[%c80, %c0_62] : memref<128x128xbf16, #tpu.memory_space<vmem>>, vector<16x128xbf16>
    %cst_63 = arith.constant dense<0.000000e+00> : vector<16x128xf32>
    %179 = tpu.matmul %177, %178, %cst_63 {dimension_numbers = #tpu.dot_dimension_numbers<[1], [0], [0], [1], [0, 0, 1, 1], [], []>} : vector<16x16xbf16>, vector<16x128xbf16>, vector<16x128xf32> -> vector<16x128xf32>
    %180 = arith.addf %153, %179 : vector<16x128xf32>
    %181 = vector.extract_strided_slice %13 {offsets = [0, 0, 96], sizes = [1, 16, 16], strides = [1, 1, 1]} : vector<1x16x128xbf16> to vector<1x16x16xbf16>
    %182 = vector.extract_strided_slice %15 {offsets = [0, 0, 96], sizes = [1, 16, 16], strides = [1, 1, 1]} : vector<1x16x128xbf16> to vector<1x16x16xbf16>
    %183 = vector.extract_strided_slice %17 {offsets = [0, 0, 96], sizes = [1, 16, 16], strides = [1, 1, 1]} : vector<1x16x128xbf16> to vector<1x16x16xbf16>
    "tpu.trace_start"() <{level = 10 : i32, message = "bnd,bmd->bnm"}> : () -> ()
    %cst_64 = arith.constant dense<0.000000e+00> : vector<1x16x16xf32>
    %184 = tpu.matmul %181, %182, %cst_64 {dimension_numbers = #tpu.dot_dimension_numbers<[2], [2], [1], [1], [0, 0, 0, 1, 1, 1], [0], [0]>} : vector<1x16x16xbf16>, vector<1x16x16xbf16>, vector<1x16x16xf32> -> vector<1x16x16xf32>
    "tpu.trace_stop"() : () -> ()
    %cst_65 = arith.constant dense<0xFF800000> : vector<1x16xf32>
    %185 = vector.multi_reduction <maximumf>, %184, %cst_65 [2] : vector<1x16x16xf32> to vector<1x16xf32>
    %186 = vector.shape_cast %185 : vector<1x16xf32> to vector<1x16x1xf32>
    %187 = vector.broadcast %186 : vector<1x16x1xf32> to vector<1x16x16xf32>
    %188 = arith.subf %184, %187 : vector<1x16x16xf32>
    %189 = math.exp %188 : vector<1x16x16xf32>
    %190 = vector.broadcast %6 : vector<1x1x16xf32> to vector<1x16x16xf32>
    %191 = arith.mulf %189, %190 : vector<1x16x16xf32>
    %cst_66 = arith.constant dense<0.000000e+00> : vector<1x16xf32>
    %192 = vector.multi_reduction <add>, %191, %cst_66 [2] : vector<1x16x16xf32> to vector<1x16xf32>
    %193 = vector.shape_cast %192 : vector<1x16xf32> to vector<1x16x1xf32>
    %cst_67 = arith.constant 9.99999997E-7 : f32
    %194 = vector.broadcast %cst_67 : f32 to vector<1x16x1xf32>
    %195 = arith.addf %193, %194 : vector<1x16x1xf32>
    %cst_68 = arith.constant 6.24999998E-8 : f32
    %196 = vector.broadcast %cst_68 : f32 to vector<1x16x16xf32>
    %197 = arith.addf %191, %196 : vector<1x16x16xf32>
    %198 = tpu.reciprocal %195 {approx = true} : vector<1x16x1xf32> -> vector<1x16x1xf32>
    %199 = vector.broadcast %198 : vector<1x16x1xf32> to vector<1x16x16xf32>
    %200 = arith.mulf %197, %199 : vector<1x16x16xf32>
    %201 = arith.truncf %200 : vector<1x16x16xf32> to vector<1x16x16xbf16>
    "tpu.trace_start"() <{level = 10 : i32, message = "bnm,bmd->bnd"}> : () -> ()
    %cst_69 = arith.constant dense<0.000000e+00> : vector<1x16x16xf32>
    %202 = tpu.matmul %201, %183, %cst_69 {dimension_numbers = #tpu.dot_dimension_numbers<[2], [1], [1], [2], [0, 0, 0, 1, 1, 2], [0], [0]>} : vector<1x16x16xbf16>, vector<1x16x16xbf16>, vector<1x16x16xf32> -> vector<1x16x16xf32>
    "tpu.trace_stop"() : () -> ()
    %203 = vector.shape_cast %202 : vector<1x16x16xf32> to vector<16x16xf32>
    %204 = arith.truncf %203 : vector<16x16xf32> to vector<16x16xbf16>
    %c96 = arith.constant 96 : index
    %c0_70 = arith.constant 0 : index
    %205 = vector.load %arg6[%c96, %c0_70] : memref<128x128xbf16, #tpu.memory_space<vmem>>, vector<16x128xbf16>
    %cst_71 = arith.constant dense<0.000000e+00> : vector<16x128xf32>
    %206 = tpu.matmul %204, %205, %cst_71 {dimension_numbers = #tpu.dot_dimension_numbers<[1], [0], [0], [1], [0, 0, 1, 1], [], []>} : vector<16x16xbf16>, vector<16x128xbf16>, vector<16x128xf32> -> vector<16x128xf32>
    %207 = arith.addf %180, %206 : vector<16x128xf32>
    %208 = vector.extract_strided_slice %13 {offsets = [0, 0, 112], sizes = [1, 16, 16], strides = [1, 1, 1]} : vector<1x16x128xbf16> to vector<1x16x16xbf16>
    %209 = vector.extract_strided_slice %15 {offsets = [0, 0, 112], sizes = [1, 16, 16], strides = [1, 1, 1]} : vector<1x16x128xbf16> to vector<1x16x16xbf16>
    %210 = vector.extract_strided_slice %17 {offsets = [0, 0, 112], sizes = [1, 16, 16], strides = [1, 1, 1]} : vector<1x16x128xbf16> to vector<1x16x16xbf16>
    "tpu.trace_start"() <{level = 10 : i32, message = "bnd,bmd->bnm"}> : () -> ()
    %cst_72 = arith.constant dense<0.000000e+00> : vector<1x16x16xf32>
    %211 = tpu.matmul %208, %209, %cst_72 {dimension_numbers = #tpu.dot_dimension_numbers<[2], [2], [1], [1], [0, 0, 0, 1, 1, 1], [0], [0]>} : vector<1x16x16xbf16>, vector<1x16x16xbf16>, vector<1x16x16xf32> -> vector<1x16x16xf32>
    "tpu.trace_stop"() : () -> ()
    %cst_73 = arith.constant dense<0xFF800000> : vector<1x16xf32>
    %212 = vector.multi_reduction <maximumf>, %211, %cst_73 [2] : vector<1x16x16xf32> to vector<1x16xf32>
    %213 = vector.shape_cast %212 : vector<1x16xf32> to vector<1x16x1xf32>
    %214 = vector.broadcast %213 : vector<1x16x1xf32> to vector<1x16x16xf32>
    %215 = arith.subf %211, %214 : vector<1x16x16xf32>
    %216 = math.exp %215 : vector<1x16x16xf32>
    %217 = vector.broadcast %6 : vector<1x1x16xf32> to vector<1x16x16xf32>
    %218 = arith.mulf %216, %217 : vector<1x16x16xf32>
    %cst_74 = arith.constant dense<0.000000e+00> : vector<1x16xf32>
    %219 = vector.multi_reduction <add>, %218, %cst_74 [2] : vector<1x16x16xf32> to vector<1x16xf32>
    %220 = vector.shape_cast %219 : vector<1x16xf32> to vector<1x16x1xf32>
    %cst_75 = arith.constant 9.99999997E-7 : f32
    %221 = vector.broadcast %cst_75 : f32 to vector<1x16x1xf32>
    %222 = arith.addf %220, %221 : vector<1x16x1xf32>
    %cst_76 = arith.constant 6.24999998E-8 : f32
    %223 = vector.broadcast %cst_76 : f32 to vector<1x16x16xf32>
    %224 = arith.addf %218, %223 : vector<1x16x16xf32>
    %225 = tpu.reciprocal %222 {approx = true} : vector<1x16x1xf32> -> vector<1x16x1xf32>
    %226 = vector.broadcast %225 : vector<1x16x1xf32> to vector<1x16x16xf32>
    %227 = arith.mulf %224, %226 : vector<1x16x16xf32>
    %228 = arith.truncf %227 : vector<1x16x16xf32> to vector<1x16x16xbf16>
    "tpu.trace_start"() <{level = 10 : i32, message = "bnm,bmd->bnd"}> : () -> ()
    %cst_77 = arith.constant dense<0.000000e+00> : vector<1x16x16xf32>
    %229 = tpu.matmul %228, %210, %cst_77 {dimension_numbers = #tpu.dot_dimension_numbers<[2], [1], [1], [2], [0, 0, 0, 1, 1, 2], [0], [0]>} : vector<1x16x16xbf16>, vector<1x16x16xbf16>, vector<1x16x16xf32> -> vector<1x16x16xf32>
    "tpu.trace_stop"() : () -> ()
    %230 = vector.shape_cast %229 : vector<1x16x16xf32> to vector<16x16xf32>
    %231 = arith.truncf %230 : vector<16x16xf32> to vector<16x16xbf16>
    %c112 = arith.constant 112 : index
    %c0_78 = arith.constant 0 : index
    %232 = vector.load %arg6[%c112, %c0_78] : memref<128x128xbf16, #tpu.memory_space<vmem>>, vector<16x128xbf16>
    %cst_79 = arith.constant dense<0.000000e+00> : vector<16x128xf32>
    %233 = tpu.matmul %231, %232, %cst_79 {dimension_numbers = #tpu.dot_dimension_numbers<[1], [0], [0], [1], [0, 0, 1, 1], [], []>} : vector<16x16xbf16>, vector<16x128xbf16>, vector<16x128xf32> -> vector<16x128xf32>
    %234 = arith.addf %207, %233 : vector<16x128xf32>
    %235 = vector.shape_cast %234 : vector<16x128xf32> to vector<1x16x128xf32>
    %c0_80 = arith.constant 0 : index
    %c0_81 = arith.constant 0 : index
    %c0_82 = arith.constant 0 : index
    %236 = vector.load %arg7[%c0_80, %c0_81, %c0_82] : memref<1x16x128xf32, #tpu.memory_space<vmem>>, vector<1x16x128xf32>
    tpu.vector_store %arg7[%c0_80, %c0_81, %c0_82], %235 {strides = array<i32>} : memref<1x16x128xf32, #tpu.memory_space<vmem>>, vector<1x16x128xf32>,
    return
  }
  func.func @transform_0(%arg0: i32) -> (i32, i32, i32) {
    %c0_i32 = arith.constant 0 : i32
    %c0_i32_0 = arith.constant 0 : i32
    %c0_i32_1 = arith.constant 0 : i32
    return %arg0, %c0_i32, %c0_i32_0 : i32, i32, i32
  }
  func.func @transform_1(%arg0: i32) -> (i32, i32, i32) {
    %c0_i32 = arith.constant 0 : i32
    %c0_i32_0 = arith.constant 0 : i32
    %c0_i32_1 = arith.constant 0 : i32
    return %arg0, %c0_i32, %c0_i32_0 : i32, i32, i32
  }
  func.func @transform_2(%arg0: i32) -> (i32, i32, i32) {
    %c0_i32 = arith.constant 0 : i32
    %c0_i32_0 = arith.constant 0 : i32
    %c0_i32_1 = arith.constant 0 : i32
    return %arg0, %c0_i32, %c0_i32_0 : i32, i32, i32
  }
  func.func @transform_3(%arg0: i32) -> (i32, i32) {
    %c0_i32 = arith.constant 0 : i32
    %c0_i32_0 = arith.constant 0 : i32
    %c0_i32_1 = arith.constant 0 : i32
    return %c0_i32, %c0_i32_0 : i32, i32
  }
  func.func @transform_4(%arg0: i32) -> (i32, i32) {
    %c0_i32 = arith.constant 0 : i32
    %c0_i32_0 = arith.constant 0 : i32
    %c0_i32_1 = arith.constant 0 : i32
    return %c0_i32, %c0_i32_0 : i32, i32
  }
  func.func @transform_5(%arg0: i32) -> (i32, i32) {
    %c0_i32 = arith.constant 0 : i32
    %c0_i32_0 = arith.constant 0 : i32
    %c0_i32_1 = arith.constant 0 : i32
    return %c0_i32, %c0_i32_0 : i32, i32
  }
  func.func @transform_6(%arg0: i32) -> (i32, i32, i32) {
    %c0_i32 = arith.constant 0 : i32
    %c0_i32_0 = arith.constant 0 : i32
    %c0_i32_1 = arith.constant 0 : i32
    return %arg0, %c0_i32, %c0_i32_0 : i32, i32, i32
  }
}

</mosaic_0001>

<llo_original>
// kernel: tpu_custom_call.1
$region0: #{tpu_custom_call.1}
  #allocation0 [shape = 'u32[]', space=smem, size = 0x4, offset = 0x4, fixed_abs, tag = 'smem constant byte address 0x4 - core index']
  #allocation1 [shape = 'u32[144,128]{1,0:T(1,128)}', space=vmem, size = 0x12000, scoped, tag = 'internal scratch']
  %s0 = inlined_call_operand.hbm [shape: bf16[2,16,128], index: 0, kind: input, shape index: {}]
  %s1 = inlined_call_operand.hbm [shape: bf16[2,16,128], index: 1, kind: input, shape index: {}]
  %s2 = inlined_call_operand.vmem [shape: f32[2,1,16], index: 2, kind: input, shape index: {}]
  %s3 = inlined_call_operand.hbm [shape: bf16[128,128], index: 3, kind: input, shape index: {}]
  %s4 = inlined_call_operand.hbm [shape: bf16[128,256], index: 4, kind: input, shape index: {}]
  %s5 = inlined_call_operand.hbm [shape: bf16[128,128], index: 5, kind: input, shape index: {}]
  %s6 = inlined_call_operand.hbm [shape: f32[2,16,128], index: 6, kind: output, shape index: {}]
  %s7 = sld [smem:[#allocation0]]
  $region77: #{tpu_custom_call.1} parent=0
    _
  %s9 = ssub.s32 1, %s7
  %s10 = scalar_select 0, %s9, %s7
  $region1: #{tpu_custom_call.1} parent=0
    #allocation2 [shape = 'u8[8192]{0}', space=vmem, size = 0x2000, scoped, tag = 'input window, operand 0']
    #allocation3 [shape = 's32[2]{0}', space=sflag, size = 0x8, scoped, tag = 'scoped memory for tpu_custom_call.1']
    #allocation4 [shape = 's32[2]{0}', space=sflag, size = 0x8, scoped, tag = 'scoped memory for tpu_custom_call.1']
    #allocation5 [shape = 'u8[8192]{0}', space=vmem, size = 0x2000, scoped, tag = 'input window, operand 1']
    #allocation6 [shape = 's32[2]{0}', space=sflag, size = 0x8, scoped, tag = 'scoped memory for tpu_custom_call.1']
    #allocation7 [shape = 'u8[32768]{0}', space=vmem, size = 0x8000, scoped, tag = 'input window, operand 3, single buffered']
    #allocation8 [shape = 'u8[65536]{0}', space=vmem, size = 0x10000, scoped, tag = 'input window, operand 4, single buffered']
    #allocation9 [shape = 's32[1]{0}', space=sflag, size = 0x4, scoped, tag = 'scoped memory for tpu_custom_call.1']
    #allocation10 [shape = 'u8[32768]{0}', space=vmem, size = 0x8000, scoped, tag = 'input window, operand 5, single buffered']
    #allocation11 [shape = 'u8[16384]{0}', space=vmem, size = 0x4000, scoped, tag = 'output window, operand 0']
    %11 = vsyncpa [#allocation3], 0
    %s12 = scalar_lea.sflag [#allocation3], 1
    %13 = vsyncpa %s12, 0
    %14 = vsyncpa [#allocation6], 0
    %s15 = scalar_lea.sflag [#allocation6], 1
    %16 = vsyncpa %s15, 0
    %17 = vsyncpa [#allocation9], 0
    %18 = vsyncpa [#allocation4], 0
    %s19 = scalar_lea.sflag [#allocation4], 1
    %20 = vsyncpa %s19, 0
    loop: start=0, step=1, limit=4
    $region2: #{tpu_custom_call.1} parent=1 // loop_pre_header
      _
    $region3: #{tpu_custom_call.1} parent=1 // loop_header
      %s22 = sphi 0, %s26
      %p23 = scmp.ge.s32.totalorder %s22, 4
      %s32 = sphi 0, %s34
      %s35 = sphi 0, %s32
      %s36 = sphi 0, %s35
      %s52 = sphi 0, %s36
      %s58 = sphi 0, %s60
      %s61 = sphi 0, %s58
      %s62 = sphi 0, %s61
      %s78 = sphi 0, %s62
      %s84 = sphi 0, %s86
      %s87 = sphi 0, %s84
      %s88 = sphi 0, %s87
      %s104 = sphi 0, %s88
      %s108 = sphi 0, %s108
      %s110 = sphi 0, %s108
      %s111 = sphi 0, %s110
      %s125 = sphi 0, %s111
      %s129 = sphi 0, %s129
      %s131 = sphi 0, %s129
      %s132 = sphi 0, %s131
      %s146 = sphi 0, %s132
      %s150 = sphi 0, %s150
      %s152 = sphi 0, %s150
      %s153 = sphi 0, %s152
      %s167 = sphi 0, %s153
      %s173 = sphi 0, %s175
      %s176 = sphi 0, %s173
      %s177 = sphi 0, %s176
      %s193 = sphi 0, %s177
    $region4: #{tpu_custom_call.1} parent=1 // loop_header_branch
      %25 = sbr.rel (%p23) target = $region8
    $region5: #{tpu_custom_call.1} parent=1 // loop_body
      %s27 = ssub.s32 %s22, 1
      %s28 = ssub.s32 %s22, 2
      %s29 = sadd.s32 %s22, 1
      %s30 = ssub.s32 %s22, %s29
      %p31 = scmp.eq.s32.totalorder %s30, 0
      %s33 = sadd.s32 %s32, 1
      %s34 = scalar_select %p31, %s32, %s33
      %p37 = pneg %p31
      %p38 = scmp.eq.s32.totalorder %s22, 1
      %p39 = por %p37, %p38
      %p40 = scmp.ne.s32.totalorder %s32, %s35
      %p41 = scmp.eq.s32.totalorder %s22, 0
      %p42 = por %p40, %p41
      %p43 = scmp.ne.s32.totalorder %s32, %s35
      %p44 = scmp.eq.s32.totalorder %s27, 1
      %p45 = por %p43, %p44
      %p46 = scmp.ne.s32.totalorder %s35, %s36
      %p47 = scmp.eq.s32.totalorder %s27, 0
      %p48 = por %p46, %p47
      %p49 = scmp.ne.s32.totalorder %s35, %s36
      %p50 = scmp.eq.s32.totalorder %s28, 1
      %p51 = por %p49, %p50
      %p53 = scmp.ne.s32.totalorder %s36, %s52
      %p54 = scmp.eq.s32.totalorder %s28, 0
      %p55 = por %p53, %p54
      %s56 = ssub.s32 %s22, %s29
      %p57 = scmp.eq.s32.totalorder %s56, 0
      %s59 = sadd.s32 %s58, 1
      %s60 = scalar_select %p57, %s58, %s59
      %p63 = pneg %p57
      %p64 = scmp.eq.s32.totalorder %s22, 1
      %p65 = por %p63, %p64
      %p66 = scmp.ne.s32.totalorder %s58, %s61
      %p67 = scmp.eq.s32.totalorder %s22, 0
      %p68 = por %p66, %p67
      %p69 = scmp.ne.s32.totalorder %s58, %s61
      %p70 = scmp.eq.s32.totalorder %s27, 1
      %p71 = por %p69, %p70
      %p72 = scmp.ne.s32.totalorder %s61, %s62
      %p73 = scmp.eq.s32.totalorder %s27, 0
      %p74 = por %p72, %p73
      %p75 = scmp.ne.s32.totalorder %s61, %s62
      %p76 = scmp.eq.s32.totalorder %s28, 1
      %p77 = por %p75, %p76
      %p79 = scmp.ne.s32.totalorder %s62, %s78
      %p80 = scmp.eq.s32.totalorder %s28, 0
      %p81 = por %p79, %p80
      %s82 = ssub.s32 %s22, %s29
      %p83 = scmp.eq.s32.totalorder %s82, 0
      %s85 = sadd.s32 %s84, 1
      %s86 = scalar_select %p83, %s84, %s85
      %p89 = pneg %p83
      %p90 = scmp.eq.s32.totalorder %s22, 1
      %p91 = por %p89, %p90
      %p92 = scmp.ne.s32.totalorder %s84, %s87
      %p93 = scmp.eq.s32.totalorder %s22, 0
      %p94 = por %p92, %p93
      %p95 = scmp.ne.s32.totalorder %s84, %s87
      %p96 = scmp.eq.s32.totalorder %s27, 1
      %p97 = por %p95, %p96
      %p98 = scmp.ne.s32.totalorder %s87, %s88
      %p99 = scmp.eq.s32.totalorder %s27, 0
      %p100 = por %p98, %p99
      %p101 = scmp.ne.s32.totalorder %s87, %s88
      %p102 = scmp.eq.s32.totalorder %s28, 1
      %p103 = por %p101, %p102
      %p105 = scmp.ne.s32.totalorder %s88, %s104
      %p106 = scmp.eq.s32.totalorder %s28, 0
      %p107 = por %p105, %p106
      %s109 = sadd.s32 %s108, 1
      %p112 = scmp.eq.s32.totalorder %s22, 1
      %p113 = scmp.ne.s32.totalorder %s108, %s110
      %p114 = scmp.eq.s32.totalorder %s22, 0
      %p115 = por %p113, %p114
      %p116 = scmp.ne.s32.totalorder %s108, %s110
      %p117 = scmp.eq.s32.totalorder %s27, 1
      %p118 = por %p116, %p117
      %p119 = scmp.ne.s32.totalorder %s110, %s111
      %p120 = scmp.eq.s32.totalorder %s27, 0
      %p121 = por %p119, %p120
      %p122 = scmp.ne.s32.totalorder %s110, %s111
      %p123 = scmp.eq.s32.totalorder %s28, 1
      %p124 = por %p122, %p123
      %p126 = scmp.ne.s32.totalorder %s111, %s125
      %p127 = scmp.eq.s32.totalorder %s28, 0
      %p128 = por %p126, %p127
      %s130 = sadd.s32 %s129, 1
      %p133 = scmp.eq.s32.totalorder %s22, 1
      %p134 = scmp.ne.s32.totalorder %s129, %s131
      %p135 = scmp.eq.s32.totalorder %s22, 0
      %p136 = por %p134, %p135
      %p137 = scmp.ne.s32.totalorder %s129, %s131
      %p138 = scmp.eq.s32.totalorder %s27, 1
      %p139 = por %p137, %p138
      %p140 = scmp.ne.s32.totalorder %s131, %s132
      %p141 = scmp.eq.s32.totalorder %s27, 0
      %p142 = por %p140, %p141
      %p143 = scmp.ne.s32.totalorder %s131, %s132
      %p144 = scmp.eq.s32.totalorder %s28, 1
      %p145 = por %p143, %p144
      %p147 = scmp.ne.s32.totalorder %s132, %s146
      %p148 = scmp.eq.s32.totalorder %s28, 0
      %p149 = por %p147, %p148
      %s151 = sadd.s32 %s150, 1
      %p154 = scmp.eq.s32.totalorder %s22, 1
      %p155 = scmp.ne.s32.totalorder %s150, %s152
      %p156 = scmp.eq.s32.totalorder %s22, 0
      %p157 = por %p155, %p156
      %p158 = scmp.ne.s32.totalorder %s150, %s152
      %p159 = scmp.eq.s32.totalorder %s27, 1
      %p160 = por %p158, %p159
      %p161 = scmp.ne.s32.totalorder %s152, %s153
      %p162 = scmp.eq.s32.totalorder %s27, 0
      %p163 = por %p161, %p162
      %p164 = scmp.ne.s32.totalorder %s152, %s153
      %p165 = scmp.eq.s32.totalorder %s28, 1
      %p166 = por %p164, %p165
      %p168 = scmp.ne.s32.totalorder %s153, %s167
      %p169 = scmp.eq.s32.totalorder %s28, 0
      %p170 = por %p168, %p169
      %s171 = ssub.s32 %s22, %s29
      %p172 = scmp.eq.s32.totalorder %s171, 0
      %s174 = sadd.s32 %s173, 1
      %s175 = scalar_select %p172, %s173, %s174
      %p178 = pneg %p172
      %p179 = scmp.eq.s32.totalorder %s22, 1
      %p180 = por %p178, %p179
      %p181 = scmp.ne.s32.totalorder %s173, %s176
      %p182 = scmp.eq.s32.totalorder %s22, 0
      %p183 = por %p181, %p182
      %p184 = scmp.ne.s32.totalorder %s173, %s176
      %p185 = scmp.eq.s32.totalorder %s27, 1
      %p186 = por %p184, %p185
      %p187 = scmp.ne.s32.totalorder %s176, %s177
      %p188 = scmp.eq.s32.totalorder %s27, 0
      %p189 = por %p187, %p188
      %p190 = scmp.ne.s32.totalorder %s176, %s177
      %p191 = scmp.eq.s32.totalorder %s28, 1
      %p192 = por %p190, %p191
      %p194 = scmp.ne.s32.totalorder %s177, %s193
      %p195 = scmp.eq.s32.totalorder %s28, 0
      %p196 = por %p194, %p195
      %p197 = scmp.le.s32.totalorder 1, %s22
      %p198 = scmp.lt.s32.totalorder %s22, 3
      %p199 = pnand %p197, %p198
      %p200 = pneg %p199
      // Predicated region
      $region9: #{tpu_custom_call.1} parent=5 // pred_check
        _
      $region10: #{tpu_custom_call.1} parent=5 // pred_check_branch
        %202 = sbr.rel (%p199) target = $region12
      $region11: #{tpu_custom_call.1} parent=5 // pred_region
        %s203 = ssub.s32 %s22, 1
        // Predicated region
        $region13: #{tpu_custom_call.1} parent=11 // pred_check
          %p204 = pneg %p121
        $region14: #{tpu_custom_call.1} parent=11 // pred_check_branch
          %206 = sbr.rel (%p204) target = $region16
        $region15: #{tpu_custom_call.1} parent=11 // pred_region
          %s208 = ssub.s32 1024, 1024
          %209 = vsyncadd [#allocation6], %s208
          %s210 = sshll.u32 [#allocation7], 4
          %s211 = int_to_ptr.vmem [resolvable:$true] %s210
          %216 = dma.hbm_to_vmem [thread:$0]  %s3, 1024, %s211, [#allocation6], 64, 64, 4
        $region16: #{tpu_custom_call.1} parent=11 // pred_fallthru
          _
        // Predicated region
        $region17: #{tpu_custom_call.1} parent=11 // pred_check
          %p217 = pneg %p142
        $region18: #{tpu_custom_call.1} parent=11 // pred_check_branch
          %219 = sbr.rel (%p217) target = $region20
        $region19: #{tpu_custom_call.1} parent=11 // pred_region
          %s221 = ssub.s32 2048, 2048
          %222 = vsyncadd [#allocation9], %s221
          %s223 = sshll.u32 [#allocation8], 4
          %s224 = int_to_ptr.vmem [resolvable:$true] %s223
          %229 = dma.hbm_to_vmem [thread:$0]  %s4, 2048, %s224, [#allocation9], 128, 128, 8
        $region20: #{tpu_custom_call.1} parent=11 // pred_fallthru
          _
        // Predicated region
        $region21: #{tpu_custom_call.1} parent=11 // pred_check
          %p230 = pneg %p163
        $region22: #{tpu_custom_call.1} parent=11 // pred_check_branch
          %232 = sbr.rel (%p230) target = $region24
        $region23: #{tpu_custom_call.1} parent=11 // pred_region
          %s234 = ssub.s32 1024, 1024
          %235 = vsyncadd [#allocation9], %s234
          %s236 = sshll.u32 [#allocation10], 4
          %s237 = int_to_ptr.vmem [resolvable:$true] %s236
          %242 = dma.hbm_to_vmem [thread:$0]  %s5, 1024, %s237, [#allocation9], 64, 64, 4
        $region24: #{tpu_custom_call.1} parent=11 // pred_fallthru
          _
      $region12: #{tpu_custom_call.1} parent=5 // pred_fallthru
        _
      %p243 = scmp.lt.s32.totalorder %s22, 2
      // Predicated region
      $region25: #{tpu_custom_call.1} parent=5 // pred_check
        %p244 = pneg %p243
      $region26: #{tpu_custom_call.1} parent=5 // pred_check_branch
        %246 = sbr.rel (%p244) target = $region28
      $region27: #{tpu_custom_call.1} parent=5 // pred_region
        // Predicated region
        $region29: #{tpu_custom_call.1} parent=27 // pred_check
          %p247 = pneg %p42
        $region30: #{tpu_custom_call.1} parent=27 // pred_check_branch
          %249 = sbr.rel (%p247) target = $region32
        $region31: #{tpu_custom_call.1} parent=27 // pred_region
          %s250 = sand.u32 %s32, 1
          %s251 = scalar_lea.sflag [#allocation3], %s250
          %s252 = sand.u32 %s32, 1
          %s253 = smul.addr %s252, 8
          %s254 = scalar_lea.vmem [#allocation2], %s253
          %s256 = ssub.s32 128, 128
          %257 = vsyncadd %s251, %s256
          %s258 = smul.addr %s22, 2
          %s259 = smul.addr %s258, 64
          %s260 = scalar_lea.hbm %s0, %s259
          %s261 = sshll.u32 %s254, 4
          %s262 = int_to_ptr.vmem [resolvable:$true] %s261
          %267 = dma.hbm_to_vmem [thread:$0]  %s260, 128, %s262, %s251, 64, 64, 4
        $region32: #{tpu_custom_call.1} parent=27 // pred_fallthru
          _
        // Predicated region
        $region33: #{tpu_custom_call.1} parent=27 // pred_check
          %p268 = pneg %p68
        $region34: #{tpu_custom_call.1} parent=27 // pred_check_branch
          %270 = sbr.rel (%p268) target = $region36
        $region35: #{tpu_custom_call.1} parent=27 // pred_region
          %s271 = sand.u32 %s22, 1
          %s272 = scalar_lea.sflag [#allocation6], %s271
          %s273 = sand.u32 %s58, 1
          %s274 = smul.addr %s273, 8
          %s275 = scalar_lea.vmem [#allocation5], %s274
          %s277 = ssub.s32 128, 128
          %278 = vsyncadd %s272, %s277
          %s279 = smul.addr %s22, 2
          %s280 = smul.addr %s279, 64
          %s281 = scalar_lea.hbm %s1, %s280
          %s282 = sshll.u32 %s275, 4
          %s283 = int_to_ptr.vmem [resolvable:$true] %s282
          %288 = dma.hbm_to_vmem [thread:$0]  %s281, 128, %s283, %s272, 64, 64, 4
        $region36: #{tpu_custom_call.1} parent=27 // pred_fallthru
          _
        // Predicated region
        $region37: #{tpu_custom_call.1} parent=27 // pred_check
          %p289 = pneg %p94
        $region38: #{tpu_custom_call.1} parent=27 // pred_check_branch
          %291 = sbr.rel (%p289) target = $region40
        $region39: #{tpu_custom_call.1} parent=27 // pred_region
          %p292 = scmp.lt.s32.totalorder %s22, 1
          %s293 = scalar_select %p292, %s22, 1
          %s294 = scalar_lea.vmem %s2, %s293
        $region40: #{tpu_custom_call.1} parent=27 // pred_fallthru
          _
      $region28: #{tpu_custom_call.1} parent=5 // pred_fallthru
        _
      %p295 = scmp.le.s32.totalorder 1, %s22
      %p296 = scmp.lt.s32.totalorder %s22, 3
      %p297 = pnand %p295, %p296
      %p298 = pneg %p297
      // Predicated region
      $region41: #{tpu_custom_call.1} parent=5 // pred_check
        _
      $region42: #{tpu_custom_call.1} parent=5 // pred_check_branch
        %300 = sbr.rel (%p297) target = $region44
      $region43: #{tpu_custom_call.1} parent=5 // pred_region
        %s301 = ssub.s32 %s22, 1
        %s302 = sand.u32 %s35, 1
        %s303 = scalar_lea.sflag [#allocation3], %s302
        %s304 = sand.u32 %s35, 1
        %s305 = smul.addr %s304, 8
        %s306 = scalar_lea.vmem [#allocation2], %s305
        // Predicated region
        $region45: #{tpu_custom_call.1} parent=43 // pred_check
          %p307 = pneg %p48
        $region46: #{tpu_custom_call.1} parent=43 // pred_check_branch
          %309 = sbr.rel (%p307) target = $region48
        $region47: #{tpu_custom_call.1} parent=43 // pred_region
          %310 = dma.done %s303, 128
        $region48: #{tpu_custom_call.1} parent=43 // pred_fallthru
          _
        %s311 = sand.u32 %s27, 1
        %s312 = scalar_lea.sflag [#allocation6], %s311
        %s313 = sand.u32 %s61, 1
        %s314 = smul.addr %s313, 8
        %s315 = scalar_lea.vmem [#allocation5], %s314
        // Predicated region
        $region49: #{tpu_custom_call.1} parent=43 // pred_check
          %p316 = pneg %p74
        $region50: #{tpu_custom_call.1} parent=43 // pred_check_branch
          %318 = sbr.rel (%p316) target = $region52
        $region51: #{tpu_custom_call.1} parent=43 // pred_region
          %319 = dma.done %s312, 128
        $region52: #{tpu_custom_call.1} parent=43 // pred_fallthru
          _
        // Predicated region
        $region53: #{tpu_custom_call.1} parent=43 // pred_check
          %p320 = pneg %p121
        $region54: #{tpu_custom_call.1} parent=43 // pred_check_branch
          %322 = sbr.rel (%p320) target = $region56
        $region55: #{tpu_custom_call.1} parent=43 // pred_region
          %323 = dma.done [#allocation6], 1024
        $region56: #{tpu_custom_call.1} parent=43 // pred_fallthru
          _
        // Predicated region
        $region57: #{tpu_custom_call.1} parent=43 // pred_check
          %p324 = pneg %p142
        $region58: #{tpu_custom_call.1} parent=43 // pred_check_branch
          %326 = sbr.rel (%p324) target = $region60
        $region59: #{tpu_custom_call.1} parent=43 // pred_region
          %327 = dma.done [#allocation9], 2048
        $region60: #{tpu_custom_call.1} parent=43 // pred_fallthru
          _
        // Predicated region
        $region61: #{tpu_custom_call.1} parent=43 // pred_check
          %p328 = pneg %p163
        $region62: #{tpu_custom_call.1} parent=43 // pred_check_branch
          %330 = sbr.rel (%p328) target = $region64
        $region63: #{tpu_custom_call.1} parent=43 // pred_region
          %331 = dma.done [#allocation9], 1024
        $region64: #{tpu_custom_call.1} parent=43 // pred_fallthru
          _
        %s332 = sand.u32 %s35, 1
        %s333 = scalar_lea.sflag [#allocation3], %s332
        %s334 = sand.u32 %s35, 1
        %s335 = smul.addr %s334, 8
        %s336 = scalar_lea.vmem [#allocation2], %s335
        %p337 = pneg %p48
        %p338 = pneg %p45
        %s339 = sand.u32 %s27, 1
        %s340 = scalar_lea.sflag [#allocation6], %s339
        %s341 = sand.u32 %s61, 1
        %s342 = smul.addr %s341, 8
        %s343 = scalar_lea.vmem [#allocation5], %s342
        %p344 = pneg %p74
        %p345 = pneg %p71
        %p346 = scmp.lt.s32.totalorder %s27, 1
        %s347 = scalar_select %p346, %s27, 1
        %s348 = scalar_lea.vmem %s2, %s347
        %p349 = pneg %p100
        %p350 = pneg %p97
        %p351 = pneg %p121
        %p352 = pneg %p118
        %p353 = pneg %p142
        %p354 = pneg %p139
        %p355 = pneg %p163
        %p356 = pneg %p160
        %p357 = pneg %p189
        %p358 = pneg %p186
        %s359 = sand.u32 %s176, 1
        %s360 = scalar_lea.sflag [#allocation4], %s359
        %s361 = sand.u32 %s176, 1
        %s362 = smul.addr %s361, 16
        %s363 = scalar_lea.vmem [#allocation11], %s362
        %p364 = scmp.lt.s32.totalorder %s27, 1
        %s365 = scalar_select %p364, %s27, 1
        %s366 = scalar_lea.vmem %s2, %s365
        %v368 = vld [vmem:[%s306] sm:$0xf]
        %v369 = vld [vmem:[%s306 + $0x4] sm:$0xf]
        %v370 = vld [vmem:[%s315] sm:$0xf]
        %v371 = vld [vmem:[%s315 + $0x4] sm:$0xf]
        %v372 = vld [vmem:[%s366] sm:$0x1]
        %v373 = vsub.f32 1.0, %v372
        %v374 = vld [vmem:[#allocation7] sm:$0xf]
        %v375 = vld [vmem:[#allocation7 + $0x4] sm:$0xf]
        %v376 = vld [vmem:[#allocation7 + $0x8] sm:$0xf]
        %v377 = vld [vmem:[#allocation7 + $0xc] sm:$0xf]
        %v378 = vld [vmem:[#allocation7 + $0x10] sm:$0xf]
        %v379 = vld [vmem:[#allocation7 + $0x14] sm:$0xf]
        %v380 = vld [vmem:[#allocation7 + $0x18] sm:$0xf]
        %v381 = vld [vmem:[#allocation7 + $0x1c] sm:$0xf]
        %v382 = vld [vmem:[#allocation7 + $0x20] sm:$0xf]
        %v383 = vld [vmem:[#allocation7 + $0x24] sm:$0xf]
        %v384 = vld [vmem:[#allocation7 + $0x28] sm:$0xf]
        %v385 = vld [vmem:[#allocation7 + $0x2c] sm:$0xf]
        %v386 = vld [vmem:[#allocation7 + $0x30] sm:$0xf]
        %v387 = vld [vmem:[#allocation7 + $0x34] sm:$0xf]
        %v388 = vld [vmem:[#allocation7 + $0x38] sm:$0xf]
        %v389 = vld [vmem:[#allocation7 + $0x3c] sm:$0xf]
        %v392 = vunpack.c.l.b16 %v368
        %v393 = vunpack.c.l.b16 %v369
        %v394 = vpack.c.b16 %v393, %v392
        %v412 = vunpack.c.l.b16 %v374
        %v413 = vunpack.c.l.b16 %v375
        %v414 = vunpack.c.l.b16 %v376
        %v415 = vunpack.c.l.b16 %v377
        %v416 = vunpack.c.l.b16 %v378
        %v417 = vunpack.c.l.b16 %v379
        %v418 = vunpack.c.l.b16 %v380
        %v419 = vunpack.c.l.b16 %v381
        %v420 = vunpack.c.l.b16 %v382
        %v421 = vunpack.c.l.b16 %v383
        %v422 = vunpack.c.l.b16 %v384
        %v423 = vunpack.c.l.b16 %v385
        %v424 = vunpack.c.l.b16 %v386
        %v425 = vunpack.c.l.b16 %v387
        %v426 = vunpack.c.l.b16 %v388
        %v427 = vunpack.c.l.b16 %v389
        %v428 = vpack.c.b16 %v413, %v412
        %v429 = vpack.c.b16 %v415, %v414
        %v430 = vpack.c.b16 %v417, %v416
        %v431 = vpack.c.b16 %v419, %v418
        %v432 = vpack.c.b16 %v421, %v420
        %v433 = vpack.c.b16 %v423, %v422
        %v434 = vpack.c.b16 %v425, %v424
        %v435 = vpack.c.b16 %v427, %v426
        %444 = vmatprep.subr.bf16.mxu0 0
        %445 = vmatpush1.bf16.msra.mxu0 %v428
        %446 = vmatprep.subr.bf16.mxu0 0
        %447 = vmatpush1.bf16.msra.mxu0 %v429
        %448 = vmatprep.subr.bf16.mxu0 0
        %449 = vmatpush1.bf16.msra.mxu0 %v430
        %450 = vmatprep.subr.bf16.mxu0 0
        %451 = vmatpush1.bf16.msra.mxu0 %v431
        %452 = vmatprep.subr.bf16.mxu0 0
        %453 = vmatpush1.bf16.msra.mxu0 %v432
        %454 = vmatprep.subr.bf16.mxu0 0
        %455 = vmatpush1.bf16.msra.mxu0 %v433
        %456 = vmatprep.subr.bf16.mxu0 0
        %457 = vmatpush1.bf16.msra.mxu0 %v434
        %458 = vmatprep.subr.bf16.mxu0 0
        %459 = vmatpush1.bf16.msra.mxu0 %v435
        %460 = vmatprep.subr.bf16.mxu0 0
        %461 = vmatpush1.bf16.msra.mxu0 0
        %462 = vmatprep.subr.bf16.mxu0 0
        %463 = vmatpush1.bf16.msra.mxu0 0
        %464 = vmatprep.subr.bf16.mxu0 0
        %465 = vmatpush1.bf16.msra.mxu0 0
        %466 = vmatprep.subr.bf16.mxu0 0
        %467 = vmatpush1.bf16.msra.mxu0 0
        %468 = vmatprep.subr.bf16.mxu0 0
        %469 = vmatpush1.bf16.msra.mxu0 0
        %470 = vmatprep.subr.bf16.mxu0 0
        %471 = vmatpush1.bf16.msra.mxu0 0
        %472 = vmatprep.subr.bf16.mxu0 0
        %473 = vmatpush1.bf16.msra.mxu0 0
        %474 = vmatprep.subr.bf16.mxu0 0
        %475 = vmatpush1.bf16.msra.mxu0 0
        %476 = vmatprep.mubr.bf16.mxu0 0
        %477 = vmatmul.mubr.bf16.gmra.mrb[0].mxu0 %v394
        %v478 = vpop.f32.mrb[0].mxu0
        %v479 = vadd.f32 0.0, %v478
        %v480 = vpop.f32.mrb[0].mxu0
        %v481 = vpop.f32.mrb[0].mxu0
        %v482 = vadd.f32 0.0, %v481
        %v483 = vpop.f32.mrb[0].mxu0
        %484 = vdwg.mxu0
        %v485 = vpack.c.bf16 %v482, %v479
        %v486 = vld [vmem:[#allocation8] sm:$0xff]
        %v487 = vld [vmem:[#allocation8 + $0x8] sm:$0xff]
        %v488 = vld [vmem:[#allocation8 + $0x10] sm:$0xff]
        %v489 = vld [vmem:[#allocation8 + $0x18] sm:$0xff]
        %v490 = vld [vmem:[#allocation8 + $0x20] sm:$0xff]
        %v491 = vld [vmem:[#allocation8 + $0x28] sm:$0xff]
        %v492 = vld [vmem:[#allocation8 + $0x30] sm:$0xff]
        %v493 = vld [vmem:[#allocation8 + $0x38] sm:$0xff]
        %v494 = vld [vmem:[#allocation8 + $0x40] sm:$0xff]
        %v495 = vld [vmem:[#allocation8 + $0x48] sm:$0xff]
        %v496 = vld [vmem:[#allocation8 + $0x50] sm:$0xff]
        %v497 = vld [vmem:[#allocation8 + $0x58] sm:$0xff]
        %v498 = vld [vmem:[#allocation8 + $0x60] sm:$0xff]
        %v499 = vld [vmem:[#allocation8 + $0x68] sm:$0xff]
        %v500 = vld [vmem:[#allocation8 + $0x70] sm:$0xff]
        %v501 = vld [vmem:[#allocation8 + $0x78] sm:$0xff]
        %v504 = vunpack.c.l.b16 %v370
        %v505 = vunpack.c.l.b16 %v371
        %v506 = vpack.c.b16 %v505, %v504
        %v524 = vunpack.c.l.b16 %v486
        %v525 = vunpack.c.h.b16 %v486
        %v526 = vunpack.c.l.b16 %v487
        %v527 = vunpack.c.h.b16 %v487
        %v528 = vunpack.c.l.b16 %v488
        %v529 = vunpack.c.h.b16 %v488
        %v530 = vunpack.c.l.b16 %v489
        %v531 = vunpack.c.h.b16 %v489
        %v532 = vunpack.c.l.b16 %v490
        %v533 = vunpack.c.h.b16 %v490
        %v534 = vunpack.c.l.b16 %v491
        %v535 = vunpack.c.h.b16 %v491
        %v536 = vunpack.c.l.b16 %v492
        %v537 = vunpack.c.h.b16 %v492
        %v538 = vunpack.c.l.b16 %v493
        %v539 = vunpack.c.h.b16 %v493
        %v540 = vunpack.c.l.b16 %v494
        %v541 = vunpack.c.h.b16 %v494
        %v542 = vunpack.c.l.b16 %v495
        %v543 = vunpack.c.h.b16 %v495
        %v544 = vunpack.c.l.b16 %v496
        %v545 = vunpack.c.h.b16 %v496
        %v546 = vunpack.c.l.b16 %v497
        %v547 = vunpack.c.h.b16 %v497
        %v548 = vunpack.c.l.b16 %v498
        %v549 = vunpack.c.h.b16 %v498
        %v550 = vunpack.c.l.b16 %v499
        %v551 = vunpack.c.h.b16 %v499
        %v552 = vunpack.c.l.b16 %v500
        %v553 = vunpack.c.h.b16 %v500
        %v554 = vunpack.c.l.b16 %v501
        %v555 = vunpack.c.h.b16 %v501
        %v556 = vpack.c.b16 %v526, %v524
        %v557 = vpack.c.b16 %v527, %v525
        %v558 = vpack.c.b16 %v530, %v528
        %v559 = vpack.c.b16 %v531, %v529
        %v560 = vpack.c.b16 %v534, %v532
        %v561 = vpack.c.b16 %v535, %v533
        %v562 = vpack.c.b16 %v538, %v536
        %v563 = vpack.c.b16 %v539, %v537
        %v564 = vpack.c.b16 %v542, %v540
        %v565 = vpack.c.b16 %v543, %v541
        %v566 = vpack.c.b16 %v546, %v544
        %v567 = vpack.c.b16 %v547, %v545
        %v568 = vpack.c.b16 %v550, %v548
        %v569 = vpack.c.b16 %v551, %v549
        %v570 = vpack.c.b16 %v554, %v552
        %v571 = vpack.c.b16 %v555, %v553
        %588 = vmatprep.subr.bf16.mxu0 %v557
        %589 = vmatpush1.bf16.msra.mxu0 %v556
        %590 = vmatprep.subr.bf16.mxu0 %v559
        %591 = vmatpush1.bf16.msra.mxu0 %v558
        %592 = vmatprep.subr.bf16.mxu0 %v561
        %593 = vmatpush1.bf16.msra.mxu0 %v560
        %594 = vmatprep.subr.bf16.mxu0 %v563
        %595 = vmatpush1.bf16.msra.mxu0 %v562
        %596 = vmatprep.subr.bf16.mxu0 %v565
        %597 = vmatpush1.bf16.msra.mxu0 %v564
        %598 = vmatprep.subr.bf16.mxu0 %v567
        %599 = vmatpush1.bf16.msra.mxu0 %v566
        %600 = vmatprep.subr.bf16.mxu0 %v569
        %601 = vmatpush1.bf16.msra.mxu0 %v568
        %602 = vmatprep.subr.bf16.mxu0 %v571
        %603 = vmatpush1.bf16.msra.mxu0 %v570
        %604 = vmatprep.subr.bf16.mxu0 0
        %605 = vmatpush1.bf16.msra.mxu0 0
        %606 = vmatprep.subr.bf16.mxu0 0
        %607 = vmatpush1.bf16.msra.mxu0 0
        %608 = vmatprep.subr.bf16.mxu0 0
        %609 = vmatpush1.bf16.msra.mxu0 0
        %610 = vmatprep.subr.bf16.mxu0 0
        %611 = vmatpush1.bf16.msra.mxu0 0
        %612 = vmatprep.subr.bf16.mxu0 0
        %613 = vmatpush1.bf16.msra.mxu0 0
        %614 = vmatprep.subr.bf16.mxu0 0
        %615 = vmatpush1.bf16.msra.mxu0 0
        %616 = vmatprep.subr.bf16.mxu0 0
        %617 = vmatpush1.bf16.msra.mxu0 0
        %618 = vmatprep.subr.bf16.mxu0 0
        %619 = vmatpush1.bf16.msra.mxu0 0
        %620 = vmatprep.mubr.bf16.mxu0 0
        %621 = vmatmul.mubr.bf16.gmra.mrb[0].mxu0 %v506
        %v622 = vpop.f32.mrb[0].mxu0
        %v623 = vadd.f32 0.0, %v622
        %v624 = vpop.f32.mrb[0].mxu0
        %v625 = vadd.f32 0.0, %v624
        %v626 = vpop.f32.mrb[0].mxu0
        %v627 = vadd.f32 0.0, %v626
        %v628 = vpop.f32.mrb[0].mxu0
        %v629 = vadd.f32 0.0, %v628
        %630 = vdwg.mxu0
        %v631 = vpack.c.bf16 %v627, %v623
        %v632 = vpack.c.bf16 %v629, %v625
        %vm633 = vcmask 130048
        %v635 = vsel %vm633, %v485, 0
        %v638 = vsel %vm633, %v631, 0
        %640 = vmatprep.subr.bf16.mxu0 0
        %641 = vmatpush1.bf16.xpose.msra.mxu0 %v638
        %642 = vmatprep.subr.bf16.mxu0 0
        %643 = vmatpush1.bf16.xpose.msra.mxu0 0
        %644 = vmatprep.subr.bf16.mxu0 0
        %645 = vmatpush1.bf16.xpose.msra.mxu0 0
        %646 = vmatprep.subr.bf16.mxu0 0
        %647 = vmatpush1.bf16.xpose.msra.mxu0 0
        %648 = vmatprep.subr.bf16.mxu0 0
        %649 = vmatpush1.bf16.xpose.msra.mxu0 0
        %650 = vmatprep.subr.bf16.mxu0 0
        %651 = vmatpush1.bf16.xpose.msra.mxu0 0
        %652 = vmatprep.subr.bf16.mxu0 0
        %653 = vmatpush1.bf16.xpose.msra.mxu0 0
        %654 = vmatprep.subr.bf16.mxu0 0
        %655 = vmatpush1.bf16.xpose.msra.mxu0 0
        %656 = vmatprep.subr.bf16.mxu0 0
        %657 = vmatpush1.bf16.xpose.msra.mxu0 0
        %658 = vmatprep.subr.bf16.mxu0 0
        %659 = vmatpush1.bf16.xpose.msra.mxu0 0
        %660 = vmatprep.subr.bf16.mxu0 0
        %661 = vmatpush1.bf16.xpose.msra.mxu0 0
        %662 = vmatprep.subr.bf16.mxu0 0
        %663 = vmatpush1.bf16.xpose.msra.mxu0 0
        %664 = vmatprep.subr.bf16.mxu0 0
        %665 = vmatpush1.bf16.xpose.msra.mxu0 0
        %666 = vmatprep.subr.bf16.mxu0 0
        %667 = vmatpush1.bf16.xpose.msra.mxu0 0
        %668 = vmatprep.subr.bf16.mxu0 0
        %669 = vmatpush1.bf16.xpose.msra.mxu0 0
        %670 = vmatprep.subr.bf16.mxu0 0
        %671 = vmatpush1.bf16.xpose.msra.mxu0 0
        %672 = vmatprep.mubr.bf16.mxu0 0
        %673 = vmatmul.mubr.bf16.gmra.mrb[0].mxu0 %v635
        %v674 = vpop.f32.mrb[0].mxu0
        %v675 = vadd.f32 0.0, %v674
        %v676 = vpop.f32.mrb[0].mxu0
        %v677 = vpop.f32.mrb[0].mxu0
        %v678 = vadd.f32 0.0, %v677
        %v679 = vpop.f32.mrb[0].mxu0
        %680 = vdwg.mxu0
        %v681 = vsel %vm633, %v675, -inf
        %682 = vmax.xlane.f32.xlu0 %v681
        %v683 = vpop.xlane.xlu0 %682
        %v684 = vsel %vm633, %v678, -inf
        %685 = vmax.xlane.f32.xlu0 %v684
        %v686 = vpop.xlane.xlu0 %685
        %v687 = vsub.f32 %v675, %v683
        %v688 = vsub.f32 %v678, %v686
        %v689 = vmul.f32 %v687, 1.442695
        %v690 = vpow.pop %v689
        %v691 = vmul.f32 %v688, 1.442695
        %v692 = vpow.pop %v691
        %v694 = vlaneseq
        %v695 = vshrl.u32 %v694, 7
        %v696 = vsub.s32 0, %v695
        %v697 = vrot.slane %v373, %v696
        %v699 = vmul.f32 %v690, %v697
        %v700 = vmul.f32 %v692, %v697
        %v701 = vsel %vm633, %v699, 0.0
        %702 = vadd.xlane.f32.xlu0 %v701
        %v703 = vpop.xlane.xlu0 %702
        %v704 = vsel %vm633, %v700, 0.0
        %705 = vadd.xlane.f32.xlu0 %v704
        %v706 = vpop.xlane.xlu0 %705
        %v707 = vadd.f32 %v703, 1e-06
        %v708 = vadd.f32 %v706, 1e-06
        %v709 = vadd.f32 %v699, 6.25e-08
        %v710 = vadd.f32 %v700, 6.25e-08
        %v711 = vrcp.pop %v707
        %v712 = vrcp.pop %v708
        %v713 = vmul.f32 %v709, %v711
        %v714 = vmul.f32 %v710, %v712
        %v715 = vpack.c.bf16 %v714, %v713
        %v717 = vsel %vm633, %v715, 0
        %719 = vmatprep.subr.bf16.mxu0 0
        %720 = vmatpush1.bf16.msra.mxu0 %v632
        %721 = vmatprep.subr.bf16.mxu0 0
        %722 = vmatpush1.bf16.msra.mxu0 0
        %723 = vmatprep.subr.bf16.mxu0 0
        %724 = vmatpush1.bf16.msra.mxu0 0
        %725 = vmatprep.subr.bf16.mxu0 0
        %726 = vmatpush1.bf16.msra.mxu0 0
        %727 = vmatprep.subr.bf16.mxu0 0
        %728 = vmatpush1.bf16.msra.mxu0 0
        %729 = vmatprep.subr.bf16.mxu0 0
        %730 = vmatpush1.bf16.msra.mxu0 0
        %731 = vmatprep.subr.bf16.mxu0 0
        %732 = vmatpush1.bf16.msra.mxu0 0
        %733 = vmatprep.subr.bf16.mxu0 0
        %734 = vmatpush1.bf16.msra.mxu0 0
        %735 = vmatprep.subr.bf16.mxu0 0
        %736 = vmatpush1.bf16.msra.mxu0 0
        %737 = vmatprep.subr.bf16.mxu0 0
        %738 = vmatpush1.bf16.msra.mxu0 0
        %739 = vmatprep.subr.bf16.mxu0 0
        %740 = vmatpush1.bf16.msra.mxu0 0
        %741 = vmatprep.subr.bf16.mxu0 0
        %742 = vmatpush1.bf16.msra.mxu0 0
        %743 = vmatprep.subr.bf16.mxu0 0
        %744 = vmatpush1.bf16.msra.mxu0 0
        %745 = vmatprep.subr.bf16.mxu0 0
        %746 = vmatpush1.bf16.msra.mxu0 0
        %747 = vmatprep.subr.bf16.mxu0 0
        %748 = vmatpush1.bf16.msra.mxu0 0
        %749 = vmatprep.subr.bf16.mxu0 0
        %750 = vmatpush1.bf16.msra.mxu0 0
        %751 = vmatprep.mubr.bf16.mxu0 0
        %752 = vmatmul.mubr.bf16.gmra.mrb[0].mxu0 %v717
        %v753 = vpop.f32.mrb[0].mxu0
        %v754 = vadd.f32 0.0, %v753
        %v755 = vpop.f32.mrb[0].mxu0
        %v756 = vpop.f32.mrb[0].mxu0
        %v757 = vadd.f32 0.0, %v756
        %v758 = vpop.f32.mrb[0].mxu0
        %759 = vdwg.mxu0
        %v760 = vpack.c.bf16 %v757, %v754
        %v761 = vld [vmem:[#allocation10] sm:$0xf]
        %v762 = vld [vmem:[#allocation10 + $0x4] sm:$0xf]
        %764 = vrot.lane.b32.xlu0 %v485, 112
        %v765 = vpop.permute.xlu0 %764
        %767 = vrot.lane.b32.xlu0 %v631, 112
        %v768 = vpop.permute.xlu0 %767
        %v770 = vsel %vm633, %v765, 0
        %v773 = vsel %vm633, %v768, 0
        %775 = vmatprep.subr.bf16.mxu0 0
        %776 = vmatpush1.bf16.xpose.msra.mxu0 %v773
        %777 = vmatprep.subr.bf16.mxu0 0
        %778 = vmatpush1.bf16.xpose.msra.mxu0 0
        %779 = vmatprep.subr.bf16.mxu0 0
        %780 = vmatpush1.bf16.xpose.msra.mxu0 0
        %781 = vmatprep.subr.bf16.mxu0 0
        %782 = vmatpush1.bf16.xpose.msra.mxu0 0
        %783 = vmatprep.subr.bf16.mxu0 0
        %784 = vmatpush1.bf16.xpose.msra.mxu0 0
        %785 = vmatprep.subr.bf16.mxu0 0
        %786 = vmatpush1.bf16.xpose.msra.mxu0 0
        %787 = vmatprep.subr.bf16.mxu0 0
        %788 = vmatpush1.bf16.xpose.msra.mxu0 0
        %789 = vmatprep.subr.bf16.mxu0 0
        %790 = vmatpush1.bf16.xpose.msra.mxu0 0
        %791 = vmatprep.subr.bf16.mxu0 0
        %792 = vmatpush1.bf16.xpose.msra.mxu0 0
        %793 = vmatprep.subr.bf16.mxu0 0
        %794 = vmatpush1.bf16.xpose.msra.mxu0 0
        %795 = vmatprep.subr.bf16.mxu0 0
        %796 = vmatpush1.bf16.xpose.msra.mxu0 0
        %797 = vmatprep.subr.bf16.mxu0 0
        %798 = vmatpush1.bf16.xpose.msra.mxu0 0
        %799 = vmatprep.subr.bf16.mxu0 0
        %800 = vmatpush1.bf16.xpose.msra.mxu0 0
        %801 = vmatprep.subr.bf16.mxu0 0
        %802 = vmatpush1.bf16.xpose.msra.mxu0 0
        %803 = vmatprep.subr.bf16.mxu0 0
        %804 = vmatpush1.bf16.xpose.msra.mxu0 0
        %805 = vmatprep.subr.bf16.mxu0 0
        %806 = vmatpush1.bf16.xpose.msra.mxu0 0
        %807 = vmatprep.mubr.bf16.mxu0 0
        %808 = vmatmul.mubr.bf16.gmra.mrb[0].mxu0 %v770
        %v809 = vpop.f32.mrb[0].mxu0
        %v810 = vadd.f32 0.0, %v809
        %v811 = vpop.f32.mrb[0].mxu0
        %v812 = vpop.f32.mrb[0].mxu0
        %v813 = vadd.f32 0.0, %v812
        %v814 = vpop.f32.mrb[0].mxu0
        %815 = vdwg.mxu0
        %v816 = vsel %vm633, %v810, -inf
        %817 = vmax.xlane.f32.xlu0 %v816
        %v818 = vpop.xlane.xlu0 %817
        %v819 = vsel %vm633, %v813, -inf
        %820 = vmax.xlane.f32.xlu0 %v819
        %v821 = vpop.xlane.xlu0 %820
        %v822 = vsub.f32 %v810, %v818
        %v823 = vsub.f32 %v813, %v821
        %v824 = vmul.f32 %v822, 1.442695
        %v825 = vpow.pop %v824
        %v826 = vmul.f32 %v823, 1.442695
        %v827 = vpow.pop %v826
        %v828 = vmul.f32 %v825, %v697
        %v829 = vmul.f32 %v827, %v697
        %v830 = vsel %vm633, %v828, 0.0
        %831 = vadd.xlane.f32.xlu0 %v830
        %v832 = vpop.xlane.xlu0 %831
        %v833 = vsel %vm633, %v829, 0.0
        %834 = vadd.xlane.f32.xlu0 %v833
        %v835 = vpop.xlane.xlu0 %834
        %v836 = vadd.f32 %v832, 1e-06
        %v837 = vadd.f32 %v835, 1e-06
        %v838 = vadd.f32 %v828, 6.25e-08
        %v839 = vadd.f32 %v829, 6.25e-08
        %v840 = vrcp.pop %v836
        %v841 = vrcp.pop %v837
        %v842 = vmul.f32 %v838, %v840
        %v843 = vmul.f32 %v839, %v841
        %v844 = vpack.c.bf16 %v843, %v842
        %846 = vrot.lane.b32.xlu0 %v632, 112
        %v847 = vpop.permute.xlu0 %846
        %v850 = vsel %vm633, %v844, 0
        %852 = vmatprep.subr.bf16.mxu0 0
        %853 = vmatpush1.bf16.msra.mxu0 %v847
        %854 = vmatprep.subr.bf16.mxu0 0
        %855 = vmatpush1.bf16.msra.mxu0 0
        %856 = vmatprep.subr.bf16.mxu0 0
        %857 = vmatpush1.bf16.msra.mxu0 0
        %858 = vmatprep.subr.bf16.mxu0 0
        %859 = vmatpush1.bf16.msra.mxu0 0
        %860 = vmatprep.subr.bf16.mxu0 0
        %861 = vmatpush1.bf16.msra.mxu0 0
        %862 = vmatprep.subr.bf16.mxu0 0
        %863 = vmatpush1.bf16.msra.mxu0 0
        %864 = vmatprep.subr.bf16.mxu0 0
        %865 = vmatpush1.bf16.msra.mxu0 0
        %866 = vmatprep.subr.bf16.mxu0 0
        %867 = vmatpush1.bf16.msra.mxu0 0
        %868 = vmatprep.subr.bf16.mxu0 0
        %869 = vmatpush1.bf16.msra.mxu0 0
        %870 = vmatprep.subr.bf16.mxu0 0
        %871 = vmatpush1.bf16.msra.mxu0 0
        %872 = vmatprep.subr.bf16.mxu0 0
        %873 = vmatpush1.bf16.msra.mxu0 0
        %874 = vmatprep.subr.bf16.mxu0 0
        %875 = vmatpush1.bf16.msra.mxu0 0
        %876 = vmatprep.subr.bf16.mxu0 0
        %877 = vmatpush1.bf16.msra.mxu0 0
        %878 = vmatprep.subr.bf16.mxu0 0
        %879 = vmatpush1.bf16.msra.mxu0 0
        %880 = vmatprep.subr.bf16.mxu0 0
        %881 = vmatpush1.bf16.msra.mxu0 0
        %882 = vmatprep.subr.bf16.mxu0 0
        %883 = vmatpush1.bf16.msra.mxu0 0
        %884 = vmatprep.mubr.bf16.mxu0 0
        %885 = vmatmul.mubr.bf16.gmra.mrb[0].mxu0 %v850
        %v886 = vpop.f32.mrb[0].mxu0
        %v887 = vadd.f32 0.0, %v886
        %v888 = vpop.f32.mrb[0].mxu0
        %v889 = vpop.f32.mrb[0].mxu0
        %v890 = vadd.f32 0.0, %v889
        %v891 = vpop.f32.mrb[0].mxu0
        %892 = vdwg.mxu0
        %v893 = vpack.c.bf16 %v890, %v887
        %v894 = vld [vmem:[#allocation10 + $0x8] sm:$0xf]
        %v895 = vld [vmem:[#allocation10 + $0xc] sm:$0xf]
        %v898 = vunpack.c.l.b16 %v894
        %v899 = vunpack.c.l.b16 %v895
        %v900 = vpack.c.b16 %v899, %v898
        %v903 = vsel %vm633, %v893, 0
        %905 = vmatprep.subr.bf16.mxu0 0
        %906 = vmatpush1.bf16.msra.mxu0 %v900
        %907 = vmatprep.subr.bf16.mxu0 0
        %908 = vmatpush1.bf16.msra.mxu0 0
        %909 = vmatprep.subr.bf16.mxu0 0
        %910 = vmatpush1.bf16.msra.mxu0 0
        %911 = vmatprep.subr.bf16.mxu0 0
        %912 = vmatpush1.bf16.msra.mxu0 0
        %913 = vmatprep.subr.bf16.mxu0 0
        %914 = vmatpush1.bf16.msra.mxu0 0
        %915 = vmatprep.subr.bf16.mxu0 0
        %916 = vmatpush1.bf16.msra.mxu0 0
        %917 = vmatprep.subr.bf16.mxu0 0
        %918 = vmatpush1.bf16.msra.mxu0 0
        %919 = vmatprep.subr.bf16.mxu0 0
        %920 = vmatpush1.bf16.msra.mxu0 0
        %921 = vmatprep.subr.bf16.mxu0 0
        %922 = vmatpush1.bf16.msra.mxu0 0
        %923 = vmatprep.subr.bf16.mxu0 0
        %924 = vmatpush1.bf16.msra.mxu0 0
        %925 = vmatprep.subr.bf16.mxu0 0
        %926 = vmatpush1.bf16.msra.mxu0 0
        %927 = vmatprep.subr.bf16.mxu0 0
        %928 = vmatpush1.bf16.msra.mxu0 0
        %929 = vmatprep.subr.bf16.mxu0 0
        %930 = vmatpush1.bf16.msra.mxu0 0
        %931 = vmatprep.subr.bf16.mxu0 0
        %932 = vmatpush1.bf16.msra.mxu0 0
        %933 = vmatprep.subr.bf16.mxu0 0
        %934 = vmatpush1.bf16.msra.mxu0 0
        %935 = vmatprep.subr.bf16.mxu0 0
        %936 = vmatpush1.bf16.msra.mxu0 0
        %937 = vmatprep.mubr.bf16.mxu0 0
        %938 = vmatmul.mubr.bf16.gmra.mrb[0].mxu0 %v903
        %v939 = vpop.f32.mrb[0].mxu0
        %v940 = vadd.f32 0.0, %v939
        %v941 = vpop.f32.mrb[0].mxu0
        %v942 = vpop.f32.mrb[0].mxu0
        %v943 = vadd.f32 0.0, %v942
        %v944 = vpop.f32.mrb[0].mxu0
        %945 = vdwg.mxu0
        %v948 = vunpack.c.l.b16 %v761
        %v949 = vunpack.c.l.b16 %v762
        %v950 = vpack.c.b16 %v949, %v948
        %v953 = vsel %vm633, %v760, 0
        %955 = vmatprep.subr.bf16.mxu0 0
        %956 = vmatpush1.bf16.msra.mxu0 %v950
        %957 = vmatprep.subr.bf16.mxu0 0
        %958 = vmatpush1.bf16.msra.mxu0 0
        %959 = vmatprep.subr.bf16.mxu0 0
        %960 = vmatpush1.bf16.msra.mxu0 0
        %961 = vmatprep.subr.bf16.mxu0 0
        %962 = vmatpush1.bf16.msra.mxu0 0
        %963 = vmatprep.subr.bf16.mxu0 0
        %964 = vmatpush1.bf16.msra.mxu0 0
        %965 = vmatprep.subr.bf16.mxu0 0
        %966 = vmatpush1.bf16.msra.mxu0 0
        %967 = vmatprep.subr.bf16.mxu0 0
        %968 = vmatpush1.bf16.msra.mxu0 0
        %969 = vmatprep.subr.bf16.mxu0 0
        %970 = vmatpush1.bf16.msra.mxu0 0
        %971 = vmatprep.subr.bf16.mxu0 0
        %972 = vmatpush1.bf16.msra.mxu0 0
        %973 = vmatprep.subr.bf16.mxu0 0
        %974 = vmatpush1.bf16.msra.mxu0 0
        %975 = vmatprep.subr.bf16.mxu0 0
        %976 = vmatpush1.bf16.msra.mxu0 0
        %977 = vmatprep.subr.bf16.mxu0 0
        %978 = vmatpush1.bf16.msra.mxu0 0
        %979 = vmatprep.subr.bf16.mxu0 0
        %980 = vmatpush1.bf16.msra.mxu0 0
        %981 = vmatprep.subr.bf16.mxu0 0
        %982 = vmatpush1.bf16.msra.mxu0 0
        %983 = vmatprep.subr.bf16.mxu0 0
        %984 = vmatpush1.bf16.msra.mxu0 0
        %985 = vmatprep.subr.bf16.mxu0 0
        %986 = vmatpush1.bf16.msra.mxu0 0
        %987 = vmatprep.mubr.bf16.mxu0 0
        %988 = vmatmul.mubr.bf16.gmra.mrb[0].mxu0 %v953
        %v989 = vpop.f32.mrb[0].mxu0
        %v990 = vadd.f32 %v940, %v989
        %v991 = vpop.f32.mrb[0].mxu0
        %v992 = vpop.f32.mrb[0].mxu0
        %v993 = vadd.f32 %v943, %v992
        %v994 = vpop.f32.mrb[0].mxu0
        %995 = vdwg.mxu0
        %996 = vrot.lane.b32.xlu0 %v485, 96
        %v997 = vpop.permute.xlu0 %996
        %998 = vrot.lane.b32.xlu0 %v631, 96
        %v999 = vpop.permute.xlu0 %998
        %v1001 = vsel %vm633, %v997, 0
        %v1004 = vsel %vm633, %v999, 0
        %1006 = vmatprep.subr.bf16.mxu0 0
        %1007 = vmatpush1.bf16.xpose.msra.mxu0 %v1004
        %1008 = vmatprep.subr.bf16.mxu0 0
        %1009 = vmatpush1.bf16.xpose.msra.mxu0 0
        %1010 = vmatprep.subr.bf16.mxu0 0
        %1011 = vmatpush1.bf16.xpose.msra.mxu0 0
        %1012 = vmatprep.subr.bf16.mxu0 0
        %1013 = vmatpush1.bf16.xpose.msra.mxu0 0
        %1014 = vmatprep.subr.bf16.mxu0 0
        %1015 = vmatpush1.bf16.xpose.msra.mxu0 0
        %1016 = vmatprep.subr.bf16.mxu0 0
        %1017 = vmatpush1.bf16.xpose.msra.mxu0 0
        %1018 = vmatprep.subr.bf16.mxu0 0
        %1019 = vmatpush1.bf16.xpose.msra.mxu0 0
        %1020 = vmatprep.subr.bf16.mxu0 0
        %1021 = vmatpush1.bf16.xpose.msra.mxu0 0
        %1022 = vmatprep.subr.bf16.mxu0 0
        %1023 = vmatpush1.bf16.xpose.msra.mxu0 0
        %1024 = vmatprep.subr.bf16.mxu0 0
        %1025 = vmatpush1.bf16.xpose.msra.mxu0 0
        %1026 = vmatprep.subr.bf16.mxu0 0
        %1027 = vmatpush1.bf16.xpose.msra.mxu0 0
        %1028 = vmatprep.subr.bf16.mxu0 0
        %1029 = vmatpush1.bf16.xpose.msra.mxu0 0
        %1030 = vmatprep.subr.bf16.mxu0 0
        %1031 = vmatpush1.bf16.xpose.msra.mxu0 0
        %1032 = vmatprep.subr.bf16.mxu0 0
        %1033 = vmatpush1.bf16.xpose.msra.mxu0 0
        %1034 = vmatprep.subr.bf16.mxu0 0
        %1035 = vmatpush1.bf16.xpose.msra.mxu0 0
        %1036 = vmatprep.subr.bf16.mxu0 0
        %1037 = vmatpush1.bf16.xpose.msra.mxu0 0
        %1038 = vmatprep.mubr.bf16.mxu0 0
        %1039 = vmatmul.mubr.bf16.gmra.mrb[0].mxu0 %v1001
        %v1040 = vpop.f32.mrb[0].mxu0
        %v1041 = vadd.f32 0.0, %v1040
        %v1042 = vpop.f32.mrb[0].mxu0
        %v1043 = vpop.f32.mrb[0].mxu0
        %v1044 = vadd.f32 0.0, %v1043
        %v1045 = vpop.f32.mrb[0].mxu0
        %1046 = vdwg.mxu0
        %v1047 = vsel %vm633, %v1041, -inf
        %1048 = vmax.xlane.f32.xlu0 %v1047
        %v1049 = vpop.xlane.xlu0 %1048
        %v1050 = vsel %vm633, %v1044, -inf
        %1051 = vmax.xlane.f32.xlu0 %v1050
        %v1052 = vpop.xlane.xlu0 %1051
        %v1053 = vsub.f32 %v1041, %v1049
        %v1054 = vsub.f32 %v1044, %v1052
        %v1055 = vmul.f32 %v1053, 1.442695
        %v1056 = vpow.pop %v1055
        %v1057 = vmul.f32 %v1054, 1.442695
        %v1058 = vpow.pop %v1057
        %v1059 = vmul.f32 %v1056, %v697
        %v1060 = vmul.f32 %v1058, %v697
        %v1061 = vsel %vm633, %v1059, 0.0
        %1062 = vadd.xlane.f32.xlu0 %v1061
        %v1063 = vpop.xlane.xlu0 %1062
        %v1064 = vsel %vm633, %v1060, 0.0
        %1065 = vadd.xlane.f32.xlu0 %v1064
        %v1066 = vpop.xlane.xlu0 %1065
        %v1067 = vadd.f32 %v1063, 1e-06
        %v1068 = vadd.f32 %v1066, 1e-06
        %v1069 = vadd.f32 %v1059, 6.25e-08
        %v1070 = vadd.f32 %v1060, 6.25e-08
        %v1071 = vrcp.pop %v1067
        %v1072 = vrcp.pop %v1068
        %v1073 = vmul.f32 %v1069, %v1071
        %v1074 = vmul.f32 %v1070, %v1072
        %v1075 = vpack.c.bf16 %v1074, %v1073
        %1076 = vrot.lane.b32.xlu0 %v632, 96
        %v1077 = vpop.permute.xlu0 %1076
        %v1080 = vsel %vm633, %v1075, 0
        %1082 = vmatprep.subr.bf16.mxu0 0
        %1083 = vmatpush1.bf16.msra.mxu0 %v1077
        %1084 = vmatprep.subr.bf16.mxu0 0
        %1085 = vmatpush1.bf16.msra.mxu0 0
        %1086 = vmatprep.subr.bf16.mxu0 0
        %1087 = vmatpush1.bf16.msra.mxu0 0
        %1088 = vmatprep.subr.bf16.mxu0 0
        %1089 = vmatpush1.bf16.msra.mxu0 0
        %1090 = vmatprep.subr.bf16.mxu0 0
        %1091 = vmatpush1.bf16.msra.mxu0 0
        %1092 = vmatprep.subr.bf16.mxu0 0
        %1093 = vmatpush1.bf16.msra.mxu0 0
        %1094 = vmatprep.subr.bf16.mxu0 0
        %1095 = vmatpush1.bf16.msra.mxu0 0
        %1096 = vmatprep.subr.bf16.mxu0 0
        %1097 = vmatpush1.bf16.msra.mxu0 0
        %1098 = vmatprep.subr.bf16.mxu0 0
        %1099 = vmatpush1.bf16.msra.mxu0 0
        %1100 = vmatprep.subr.bf16.mxu0 0
        %1101 = vmatpush1.bf16.msra.mxu0 0
        %1102 = vmatprep.subr.bf16.mxu0 0
        %1103 = vmatpush1.bf16.msra.mxu0 0
        %1104 = vmatprep.subr.bf16.mxu0 0
        %1105 = vmatpush1.bf16.msra.mxu0 0
        %1106 = vmatprep.subr.bf16.mxu0 0
        %1107 = vmatpush1.bf16.msra.mxu0 0
        %1108 = vmatprep.subr.bf16.mxu0 0
        %1109 = vmatpush1.bf16.msra.mxu0 0
        %1110 = vmatprep.subr.bf16.mxu0 0
        %1111 = vmatpush1.bf16.msra.mxu0 0
        %1112 = vmatprep.subr.bf16.mxu0 0
        %1113 = vmatpush1.bf16.msra.mxu0 0
        %1114 = vmatprep.mubr.bf16.mxu0 0
        %1115 = vmatmul.mubr.bf16.gmra.mrb[0].mxu0 %v1080
        %v1116 = vpop.f32.mrb[0].mxu0
        %v1117 = vadd.f32 0.0, %v1116
        %v1118 = vpop.f32.mrb[0].mxu0
        %v1119 = vpop.f32.mrb[0].mxu0
        %v1120 = vadd.f32 0.0, %v1119
        %v1121 = vpop.f32.mrb[0].mxu0
        %1122 = vdwg.mxu0
        %v1123 = vpack.c.bf16 %v1120, %v1117
        %v1124 = vld [vmem:[#allocation10 + $0x10] sm:$0xf]
        %v1125 = vld [vmem:[#allocation10 + $0x14] sm:$0xf]
        %v1128 = vunpack.c.l.b16 %v1124
        %v1129 = vunpack.c.l.b16 %v1125
        %v1130 = vpack.c.b16 %v1129, %v1128
        %v1133 = vsel %vm633, %v1123, 0
        %1135 = vmatprep.subr.bf16.mxu0 0
        %1136 = vmatpush1.bf16.msra.mxu0 %v1130
        %1137 = vmatprep.subr.bf16.mxu0 0
        %1138 = vmatpush1.bf16.msra.mxu0 0
        %1139 = vmatprep.subr.bf16.mxu0 0
        %1140 = vmatpush1.bf16.msra.mxu0 0
        %1141 = vmatprep.subr.bf16.mxu0 0
        %1142 = vmatpush1.bf16.msra.mxu0 0
        %1143 = vmatprep.subr.bf16.mxu0 0
        %1144 = vmatpush1.bf16.msra.mxu0 0
        %1145 = vmatprep.subr.bf16.mxu0 0
        %1146 = vmatpush1.bf16.msra.mxu0 0
        %1147 = vmatprep.subr.bf16.mxu0 0
        %1148 = vmatpush1.bf16.msra.mxu0 0
        %1149 = vmatprep.subr.bf16.mxu0 0
        %1150 = vmatpush1.bf16.msra.mxu0 0
        %1151 = vmatprep.subr.bf16.mxu0 0
        %1152 = vmatpush1.bf16.msra.mxu0 0
        %1153 = vmatprep.subr.bf16.mxu0 0
        %1154 = vmatpush1.bf16.msra.mxu0 0
        %1155 = vmatprep.subr.bf16.mxu0 0
        %1156 = vmatpush1.bf16.msra.mxu0 0
        %1157 = vmatprep.subr.bf16.mxu0 0
        %1158 = vmatpush1.bf16.msra.mxu0 0
        %1159 = vmatprep.subr.bf16.mxu0 0
        %1160 = vmatpush1.bf16.msra.mxu0 0
        %1161 = vmatprep.subr.bf16.mxu0 0
        %1162 = vmatpush1.bf16.msra.mxu0 0
        %1163 = vmatprep.subr.bf16.mxu0 0
        %1164 = vmatpush1.bf16.msra.mxu0 0
        %1165 = vmatprep.subr.bf16.mxu0 0
        %1166 = vmatpush1.bf16.msra.mxu0 0
        %1167 = vmatprep.mubr.bf16.mxu0 0
        %1168 = vmatmul.mubr.bf16.gmra.mrb[0].mxu0 %v1133
        %v1169 = vpop.f32.mrb[0].mxu0
        %v1170 = vadd.f32 0.0, %v1169
        %v1171 = vpop.f32.mrb[0].mxu0
        %v1172 = vpop.f32.mrb[0].mxu0
        %v1173 = vadd.f32 0.0, %v1172
        %v1174 = vpop.f32.mrb[0].mxu0
        %1175 = vdwg.mxu0
        %v1176 = vadd.f32 %v990, %v1170
        %v1177 = vadd.f32 %v993, %v1173
        %1178 = vrot.lane.b32.xlu0 %v485, 80
        %v1179 = vpop.permute.xlu0 %1178
        %1180 = vrot.lane.b32.xlu0 %v631, 80
        %v1181 = vpop.permute.xlu0 %1180
        %v1183 = vsel %vm633, %v1179, 0
        %v1186 = vsel %vm633, %v1181, 0
        %1188 = vmatprep.subr.bf16.mxu0 0
        %1189 = vmatpush1.bf16.xpose.msra.mxu0 %v1186
        %1190 = vmatprep.subr.bf16.mxu0 0
        %1191 = vmatpush1.bf16.xpose.msra.mxu0 0
        %1192 = vmatprep.subr.bf16.mxu0 0
        %1193 = vmatpush1.bf16.xpose.msra.mxu0 0
        %1194 = vmatprep.subr.bf16.mxu0 0
        %1195 = vmatpush1.bf16.xpose.msra.mxu0 0
        %1196 = vmatprep.subr.bf16.mxu0 0
        %1197 = vmatpush1.bf16.xpose.msra.mxu0 0
        %1198 = vmatprep.subr.bf16.mxu0 0
        %1199 = vmatpush1.bf16.xpose.msra.mxu0 0
        %1200 = vmatprep.subr.bf16.mxu0 0
        %1201 = vmatpush1.bf16.xpose.msra.mxu0 0
        %1202 = vmatprep.subr.bf16.mxu0 0
        %1203 = vmatpush1.bf16.xpose.msra.mxu0 0
        %1204 = vmatprep.subr.bf16.mxu0 0
        %1205 = vmatpush1.bf16.xpose.msra.mxu0 0
        %1206 = vmatprep.subr.bf16.mxu0 0
        %1207 = vmatpush1.bf16.xpose.msra.mxu0 0
        %1208 = vmatprep.subr.bf16.mxu0 0
        %1209 = vmatpush1.bf16.xpose.msra.mxu0 0
        %1210 = vmatprep.subr.bf16.mxu0 0
        %1211 = vmatpush1.bf16.xpose.msra.mxu0 0
        %1212 = vmatprep.subr.bf16.mxu0 0
        %1213 = vmatpush1.bf16.xpose.msra.mxu0 0
        %1214 = vmatprep.subr.bf16.mxu0 0
        %1215 = vmatpush1.bf16.xpose.msra.mxu0 0
        %1216 = vmatprep.subr.bf16.mxu0 0
        %1217 = vmatpush1.bf16.xpose.msra.mxu0 0
        %1218 = vmatprep.subr.bf16.mxu0 0
        %1219 = vmatpush1.bf16.xpose.msra.mxu0 0
        %1220 = vmatprep.mubr.bf16.mxu0 0
        %1221 = vmatmul.mubr.bf16.gmra.mrb[0].mxu0 %v1183
        %v1222 = vpop.f32.mrb[0].mxu0
        %v1223 = vadd.f32 0.0, %v1222
        %v1224 = vpop.f32.mrb[0].mxu0
        %v1225 = vpop.f32.mrb[0].mxu0
        %v1226 = vadd.f32 0.0, %v1225
        %v1227 = vpop.f32.mrb[0].mxu0
        %1228 = vdwg.mxu0
        %v1229 = vsel %vm633, %v1223, -inf
        %1230 = vmax.xlane.f32.xlu0 %v1229
        %v1231 = vpop.xlane.xlu0 %1230
        %v1232 = vsel %vm633, %v1226, -inf
        %1233 = vmax.xlane.f32.xlu0 %v1232
        %v1234 = vpop.xlane.xlu0 %1233
        %v1235 = vsub.f32 %v1223, %v1231
        %v1236 = vsub.f32 %v1226, %v1234
        %v1237 = vmul.f32 %v1235, 1.442695
        %v1238 = vpow.pop %v1237
        %v1239 = vmul.f32 %v1236, 1.442695
        %v1240 = vpow.pop %v1239
        %v1241 = vmul.f32 %v1238, %v697
        %v1242 = vmul.f32 %v1240, %v697
        %v1243 = vsel %vm633, %v1241, 0.0
        %1244 = vadd.xlane.f32.xlu0 %v1243
        %v1245 = vpop.xlane.xlu0 %1244
        %v1246 = vsel %vm633, %v1242, 0.0
        %1247 = vadd.xlane.f32.xlu0 %v1246
        %v1248 = vpop.xlane.xlu0 %1247
        %v1249 = vadd.f32 %v1245, 1e-06
        %v1250 = vadd.f32 %v1248, 1e-06
        %v1251 = vadd.f32 %v1241, 6.25e-08
        %v1252 = vadd.f32 %v1242, 6.25e-08
        %v1253 = vrcp.pop %v1249
        %v1254 = vrcp.pop %v1250
        %v1255 = vmul.f32 %v1251, %v1253
        %v1256 = vmul.f32 %v1252, %v1254
        %v1257 = vpack.c.bf16 %v1256, %v1255
        %1258 = vrot.lane.b32.xlu0 %v632, 80
        %v1259 = vpop.permute.xlu0 %1258
        %v1262 = vsel %vm633, %v1257, 0
        %1264 = vmatprep.subr.bf16.mxu0 0
        %1265 = vmatpush1.bf16.msra.mxu0 %v1259
        %1266 = vmatprep.subr.bf16.mxu0 0
        %1267 = vmatpush1.bf16.msra.mxu0 0
        %1268 = vmatprep.subr.bf16.mxu0 0
        %1269 = vmatpush1.bf16.msra.mxu0 0
        %1270 = vmatprep.subr.bf16.mxu0 0
        %1271 = vmatpush1.bf16.msra.mxu0 0
        %1272 = vmatprep.subr.bf16.mxu0 0
        %1273 = vmatpush1.bf16.msra.mxu0 0
        %1274 = vmatprep.subr.bf16.mxu0 0
        %1275 = vmatpush1.bf16.msra.mxu0 0
        %1276 = vmatprep.subr.bf16.mxu0 0
        %1277 = vmatpush1.bf16.msra.mxu0 0
        %1278 = vmatprep.subr.bf16.mxu0 0
        %1279 = vmatpush1.bf16.msra.mxu0 0
        %1280 = vmatprep.subr.bf16.mxu0 0
        %1281 = vmatpush1.bf16.msra.mxu0 0
        %1282 = vmatprep.subr.bf16.mxu0 0
        %1283 = vmatpush1.bf16.msra.mxu0 0
        %1284 = vmatprep.subr.bf16.mxu0 0
        %1285 = vmatpush1.bf16.msra.mxu0 0
        %1286 = vmatprep.subr.bf16.mxu0 0
        %1287 = vmatpush1.bf16.msra.mxu0 0
        %1288 = vmatprep.subr.bf16.mxu0 0
        %1289 = vmatpush1.bf16.msra.mxu0 0
        %1290 = vmatprep.subr.bf16.mxu0 0
        %1291 = vmatpush1.bf16.msra.mxu0 0
        %1292 = vmatprep.subr.bf16.mxu0 0
        %1293 = vmatpush1.bf16.msra.mxu0 0
        %1294 = vmatprep.subr.bf16.mxu0 0
        %1295 = vmatpush1.bf16.msra.mxu0 0
        %1296 = vmatprep.mubr.bf16.mxu0 0
        %1297 = vmatmul.mubr.bf16.gmra.mrb[0].mxu0 %v1262
        %v1298 = vpop.f32.mrb[0].mxu0
        %v1299 = vadd.f32 0.0, %v1298
        %v1300 = vpop.f32.mrb[0].mxu0
        %v1301 = vpop.f32.mrb[0].mxu0
        %v1302 = vadd.f32 0.0, %v1301
        %v1303 = vpop.f32.mrb[0].mxu0
        %1304 = vdwg.mxu0
        %v1305 = vpack.c.bf16 %v1302, %v1299
        %v1306 = vld [vmem:[#allocation10 + $0x18] sm:$0xf]
        %v1307 = vld [vmem:[#allocation10 + $0x1c] sm:$0xf]
        %v1310 = vunpack.c.l.b16 %v1306
        %v1311 = vunpack.c.l.b16 %v1307
        %v1312 = vpack.c.b16 %v1311, %v1310
        %v1315 = vsel %vm633, %v1305, 0
        %1317 = vmatprep.subr.bf16.mxu0 0
        %1318 = vmatpush1.bf16.msra.mxu0 %v1312
        %1319 = vmatprep.subr.bf16.mxu0 0
        %1320 = vmatpush1.bf16.msra.mxu0 0
        %1321 = vmatprep.subr.bf16.mxu0 0
        %1322 = vmatpush1.bf16.msra.mxu0 0
        %1323 = vmatprep.subr.bf16.mxu0 0
        %1324 = vmatpush1.bf16.msra.mxu0 0
        %1325 = vmatprep.subr.bf16.mxu0 0
        %1326 = vmatpush1.bf16.msra.mxu0 0
        %1327 = vmatprep.subr.bf16.mxu0 0
        %1328 = vmatpush1.bf16.msra.mxu0 0
        %1329 = vmatprep.subr.bf16.mxu0 0
        %1330 = vmatpush1.bf16.msra.mxu0 0
        %1331 = vmatprep.subr.bf16.mxu0 0
        %1332 = vmatpush1.bf16.msra.mxu0 0
        %1333 = vmatprep.subr.bf16.mxu0 0
        %1334 = vmatpush1.bf16.msra.mxu0 0
        %1335 = vmatprep.subr.bf16.mxu0 0
        %1336 = vmatpush1.bf16.msra.mxu0 0
        %1337 = vmatprep.subr.bf16.mxu0 0
        %1338 = vmatpush1.bf16.msra.mxu0 0
        %1339 = vmatprep.subr.bf16.mxu0 0
        %1340 = vmatpush1.bf16.msra.mxu0 0
        %1341 = vmatprep.subr.bf16.mxu0 0
        %1342 = vmatpush1.bf16.msra.mxu0 0
        %1343 = vmatprep.subr.bf16.mxu0 0
        %1344 = vmatpush1.bf16.msra.mxu0 0
        %1345 = vmatprep.subr.bf16.mxu0 0
        %1346 = vmatpush1.bf16.msra.mxu0 0
        %1347 = vmatprep.subr.bf16.mxu0 0
        %1348 = vmatpush1.bf16.msra.mxu0 0
        %1349 = vmatprep.mubr.bf16.mxu0 0
        %1350 = vmatmul.mubr.bf16.gmra.mrb[0].mxu0 %v1315
        %v1351 = vpop.f32.mrb[0].mxu0
        %v1352 = vadd.f32 0.0, %v1351
        %v1353 = vpop.f32.mrb[0].mxu0
        %v1354 = vpop.f32.mrb[0].mxu0
        %v1355 = vadd.f32 0.0, %v1354
        %v1356 = vpop.f32.mrb[0].mxu0
        %1357 = vdwg.mxu0
        %v1358 = vadd.f32 %v1176, %v1352
        %v1359 = vadd.f32 %v1177, %v1355
        %1360 = vrot.lane.b32.xlu0 %v485, 64
        %v1361 = vpop.permute.xlu0 %1360
        %1362 = vrot.lane.b32.xlu0 %v631, 64
        %v1363 = vpop.permute.xlu0 %1362
        %v1365 = vsel %vm633, %v1361, 0
        %v1368 = vsel %vm633, %v1363, 0
        %1370 = vmatprep.subr.bf16.mxu0 0
        %1371 = vmatpush1.bf16.xpose.msra.mxu0 %v1368
        %1372 = vmatprep.subr.bf16.mxu0 0
        %1373 = vmatpush1.bf16.xpose.msra.mxu0 0
        %1374 = vmatprep.subr.bf16.mxu0 0
        %1375 = vmatpush1.bf16.xpose.msra.mxu0 0
        %1376 = vmatprep.subr.bf16.mxu0 0
        %1377 = vmatpush1.bf16.xpose.msra.mxu0 0
        %1378 = vmatprep.subr.bf16.mxu0 0
        %1379 = vmatpush1.bf16.xpose.msra.mxu0 0
        %1380 = vmatprep.subr.bf16.mxu0 0
        %1381 = vmatpush1.bf16.xpose.msra.mxu0 0
        %1382 = vmatprep.subr.bf16.mxu0 0
        %1383 = vmatpush1.bf16.xpose.msra.mxu0 0
        %1384 = vmatprep.subr.bf16.mxu0 0
        %1385 = vmatpush1.bf16.xpose.msra.mxu0 0
        %1386 = vmatprep.subr.bf16.mxu0 0
        %1387 = vmatpush1.bf16.xpose.msra.mxu0 0
        %1388 = vmatprep.subr.bf16.mxu0 0
        %1389 = vmatpush1.bf16.xpose.msra.mxu0 0
        %1390 = vmatprep.subr.bf16.mxu0 0
        %1391 = vmatpush1.bf16.xpose.msra.mxu0 0
        %1392 = vmatprep.subr.bf16.mxu0 0
        %1393 = vmatpush1.bf16.xpose.msra.mxu0 0
        %1394 = vmatprep.subr.bf16.mxu0 0
        %1395 = vmatpush1.bf16.xpose.msra.mxu0 0
        %1396 = vmatprep.subr.bf16.mxu0 0
        %1397 = vmatpush1.bf16.xpose.msra.mxu0 0
        %1398 = vmatprep.subr.bf16.mxu0 0
        %1399 = vmatpush1.bf16.xpose.msra.mxu0 0
        %1400 = vmatprep.subr.bf16.mxu0 0
        %1401 = vmatpush1.bf16.xpose.msra.mxu0 0
        %1402 = vmatprep.mubr.bf16.mxu0 0
        %1403 = vmatmul.mubr.bf16.gmra.mrb[0].mxu0 %v1365
        %v1404 = vpop.f32.mrb[0].mxu0
        %v1405 = vadd.f32 0.0, %v1404
        %v1406 = vpop.f32.mrb[0].mxu0
        %v1407 = vpop.f32.mrb[0].mxu0
        %v1408 = vadd.f32 0.0, %v1407
        %v1409 = vpop.f32.mrb[0].mxu0
        %1410 = vdwg.mxu0
        %v1411 = vsel %vm633, %v1405, -inf
        %1412 = vmax.xlane.f32.xlu0 %v1411
        %v1413 = vpop.xlane.xlu0 %1412
        %v1414 = vsel %vm633, %v1408, -inf
        %1415 = vmax.xlane.f32.xlu0 %v1414
        %v1416 = vpop.xlane.xlu0 %1415
        %v1417 = vsub.f32 %v1405, %v1413
        %v1418 = vsub.f32 %v1408, %v1416
        %v1419 = vmul.f32 %v1417, 1.442695
        %v1420 = vpow.pop %v1419
        %v1421 = vmul.f32 %v1418, 1.442695
        %v1422 = vpow.pop %v1421
        %v1423 = vmul.f32 %v1420, %v697
        %v1424 = vmul.f32 %v1422, %v697
        %v1425 = vsel %vm633, %v1423, 0.0
        %1426 = vadd.xlane.f32.xlu0 %v1425
        %v1427 = vpop.xlane.xlu0 %1426
        %v1428 = vsel %vm633, %v1424, 0.0
        %1429 = vadd.xlane.f32.xlu0 %v1428
        %v1430 = vpop.xlane.xlu0 %1429
        %v1431 = vadd.f32 %v1427, 1e-06
        %v1432 = vadd.f32 %v1430, 1e-06
        %v1433 = vadd.f32 %v1423, 6.25e-08
        %v1434 = vadd.f32 %v1424, 6.25e-08
        %v1435 = vrcp.pop %v1431
        %v1436 = vrcp.pop %v1432
        %v1437 = vmul.f32 %v1433, %v1435
        %v1438 = vmul.f32 %v1434, %v1436
        %v1439 = vpack.c.bf16 %v1438, %v1437
        %1440 = vrot.lane.b32.xlu0 %v632, 64
        %v1441 = vpop.permute.xlu0 %1440
        %v1444 = vsel %vm633, %v1439, 0
        %1446 = vmatprep.subr.bf16.mxu0 0
        %1447 = vmatpush1.bf16.msra.mxu0 %v1441
        %1448 = vmatprep.subr.bf16.mxu0 0
        %1449 = vmatpush1.bf16.msra.mxu0 0
        %1450 = vmatprep.subr.bf16.mxu0 0
        %1451 = vmatpush1.bf16.msra.mxu0 0
        %1452 = vmatprep.subr.bf16.mxu0 0
        %1453 = vmatpush1.bf16.msra.mxu0 0
        %1454 = vmatprep.subr.bf16.mxu0 0
        %1455 = vmatpush1.bf16.msra.mxu0 0
        %1456 = vmatprep.subr.bf16.mxu0 0
        %1457 = vmatpush1.bf16.msra.mxu0 0
        %1458 = vmatprep.subr.bf16.mxu0 0
        %1459 = vmatpush1.bf16.msra.mxu0 0
        %1460 = vmatprep.subr.bf16.mxu0 0
        %1461 = vmatpush1.bf16.msra.mxu0 0
        %1462 = vmatprep.subr.bf16.mxu0 0
        %1463 = vmatpush1.bf16.msra.mxu0 0
        %1464 = vmatprep.subr.bf16.mxu0 0
        %1465 = vmatpush1.bf16.msra.mxu0 0
        %1466 = vmatprep.subr.bf16.mxu0 0
        %1467 = vmatpush1.bf16.msra.mxu0 0
        %1468 = vmatprep.subr.bf16.mxu0 0
        %1469 = vmatpush1.bf16.msra.mxu0 0
        %1470 = vmatprep.subr.bf16.mxu0 0
        %1471 = vmatpush1.bf16.msra.mxu0 0
        %1472 = vmatprep.subr.bf16.mxu0 0
        %1473 = vmatpush1.bf16.msra.mxu0 0
        %1474 = vmatprep.subr.bf16.mxu0 0
        %1475 = vmatpush1.bf16.msra.mxu0 0
        %1476 = vmatprep.subr.bf16.mxu0 0
        %1477 = vmatpush1.bf16.msra.mxu0 0
        %1478 = vmatprep.mubr.bf16.mxu0 0
        %1479 = vmatmul.mubr.bf16.gmra.mrb[0].mxu0 %v1444
        %v1480 = vpop.f32.mrb[0].mxu0
        %v1481 = vadd.f32 0.0, %v1480
        %v1482 = vpop.f32.mrb[0].mxu0
        %v1483 = vpop.f32.mrb[0].mxu0
        %v1484 = vadd.f32 0.0, %v1483
        %v1485 = vpop.f32.mrb[0].mxu0
        %1486 = vdwg.mxu0
        %v1487 = vpack.c.bf16 %v1484, %v1481
        %v1488 = vld [vmem:[#allocation10 + $0x20] sm:$0xf]
        %v1489 = vld [vmem:[#allocation10 + $0x24] sm:$0xf]
        %v1492 = vunpack.c.l.b16 %v1488
        %v1493 = vunpack.c.l.b16 %v1489
        %v1494 = vpack.c.b16 %v1493, %v1492
        %v1497 = vsel %vm633, %v1487, 0
        %1499 = vmatprep.subr.bf16.mxu0 0
        %1500 = vmatpush1.bf16.msra.mxu0 %v1494
        %1501 = vmatprep.subr.bf16.mxu0 0
        %1502 = vmatpush1.bf16.msra.mxu0 0
        %1503 = vmatprep.subr.bf16.mxu0 0
        %1504 = vmatpush1.bf16.msra.mxu0 0
        %1505 = vmatprep.subr.bf16.mxu0 0
        %1506 = vmatpush1.bf16.msra.mxu0 0
        %1507 = vmatprep.subr.bf16.mxu0 0
        %1508 = vmatpush1.bf16.msra.mxu0 0
        %1509 = vmatprep.subr.bf16.mxu0 0
        %1510 = vmatpush1.bf16.msra.mxu0 0
        %1511 = vmatprep.subr.bf16.mxu0 0
        %1512 = vmatpush1.bf16.msra.mxu0 0
        %1513 = vmatprep.subr.bf16.mxu0 0
        %1514 = vmatpush1.bf16.msra.mxu0 0
        %1515 = vmatprep.subr.bf16.mxu0 0
        %1516 = vmatpush1.bf16.msra.mxu0 0
        %1517 = vmatprep.subr.bf16.mxu0 0
        %1518 = vmatpush1.bf16.msra.mxu0 0
        %1519 = vmatprep.subr.bf16.mxu0 0
        %1520 = vmatpush1.bf16.msra.mxu0 0
        %1521 = vmatprep.subr.bf16.mxu0 0
        %1522 = vmatpush1.bf16.msra.mxu0 0
        %1523 = vmatprep.subr.bf16.mxu0 0
        %1524 = vmatpush1.bf16.msra.mxu0 0
        %1525 = vmatprep.subr.bf16.mxu0 0
        %1526 = vmatpush1.bf16.msra.mxu0 0
        %1527 = vmatprep.subr.bf16.mxu0 0
        %1528 = vmatpush1.bf16.msra.mxu0 0
        %1529 = vmatprep.subr.bf16.mxu0 0
        %1530 = vmatpush1.bf16.msra.mxu0 0
        %1531 = vmatprep.mubr.bf16.mxu0 0
        %1532 = vmatmul.mubr.bf16.gmra.mrb[0].mxu0 %v1497
        %v1533 = vpop.f32.mrb[0].mxu0
        %v1534 = vadd.f32 0.0, %v1533
        %v1535 = vpop.f32.mrb[0].mxu0
        %v1536 = vpop.f32.mrb[0].mxu0
        %v1537 = vadd.f32 0.0, %v1536
        %v1538 = vpop.f32.mrb[0].mxu0
        %1539 = vdwg.mxu0
        %v1540 = vadd.f32 %v1358, %v1534
        %v1541 = vadd.f32 %v1359, %v1537
        %1542 = vrot.lane.b32.xlu0 %v485, 48
        %v1543 = vpop.permute.xlu0 %1542
        %1544 = vrot.lane.b32.xlu0 %v631, 48
        %v1545 = vpop.permute.xlu0 %1544
        %v1547 = vsel %vm633, %v1543, 0
        %v1550 = vsel %vm633, %v1545, 0
        %1552 = vmatprep.subr.bf16.mxu0 0
        %1553 = vmatpush1.bf16.xpose.msra.mxu0 %v1550
        %1554 = vmatprep.subr.bf16.mxu0 0
        %1555 = vmatpush1.bf16.xpose.msra.mxu0 0
        %1556 = vmatprep.subr.bf16.mxu0 0
        %1557 = vmatpush1.bf16.xpose.msra.mxu0 0
        %1558 = vmatprep.subr.bf16.mxu0 0
        %1559 = vmatpush1.bf16.xpose.msra.mxu0 0
        %1560 = vmatprep.subr.bf16.mxu0 0
        %1561 = vmatpush1.bf16.xpose.msra.mxu0 0
        %1562 = vmatprep.subr.bf16.mxu0 0
        %1563 = vmatpush1.bf16.xpose.msra.mxu0 0
        %1564 = vmatprep.subr.bf16.mxu0 0
        %1565 = vmatpush1.bf16.xpose.msra.mxu0 0
        %1566 = vmatprep.subr.bf16.mxu0 0
        %1567 = vmatpush1.bf16.xpose.msra.mxu0 0
        %1568 = vmatprep.subr.bf16.mxu0 0
        %1569 = vmatpush1.bf16.xpose.msra.mxu0 0
        %1570 = vmatprep.subr.bf16.mxu0 0
        %1571 = vmatpush1.bf16.xpose.msra.mxu0 0
        %1572 = vmatprep.subr.bf16.mxu0 0
        %1573 = vmatpush1.bf16.xpose.msra.mxu0 0
        %1574 = vmatprep.subr.bf16.mxu0 0
        %1575 = vmatpush1.bf16.xpose.msra.mxu0 0
        %1576 = vmatprep.subr.bf16.mxu0 0
        %1577 = vmatpush1.bf16.xpose.msra.mxu0 0
        %1578 = vmatprep.subr.bf16.mxu0 0
        %1579 = vmatpush1.bf16.xpose.msra.mxu0 0
        %1580 = vmatprep.subr.bf16.mxu0 0
        %1581 = vmatpush1.bf16.xpose.msra.mxu0 0
        %1582 = vmatprep.subr.bf16.mxu0 0
        %1583 = vmatpush1.bf16.xpose.msra.mxu0 0
        %1584 = vmatprep.mubr.bf16.mxu0 0
        %1585 = vmatmul.mubr.bf16.gmra.mrb[0].mxu0 %v1547
        %v1586 = vpop.f32.mrb[0].mxu0
        %v1587 = vadd.f32 0.0, %v1586
        %v1588 = vpop.f32.mrb[0].mxu0
        %v1589 = vpop.f32.mrb[0].mxu0
        %v1590 = vadd.f32 0.0, %v1589
        %v1591 = vpop.f32.mrb[0].mxu0
        %1592 = vdwg.mxu0
        %v1593 = vsel %vm633, %v1587, -inf
        %1594 = vmax.xlane.f32.xlu0 %v1593
        %v1595 = vpop.xlane.xlu0 %1594
        %v1596 = vsel %vm633, %v1590, -inf
        %1597 = vmax.xlane.f32.xlu0 %v1596
        %v1598 = vpop.xlane.xlu0 %1597
        %v1599 = vsub.f32 %v1587, %v1595
        %v1600 = vsub.f32 %v1590, %v1598
        %v1601 = vmul.f32 %v1599, 1.442695
        %v1602 = vpow.pop %v1601
        %v1603 = vmul.f32 %v1600, 1.442695
        %v1604 = vpow.pop %v1603
        %v1605 = vmul.f32 %v1602, %v697
        %v1606 = vmul.f32 %v1604, %v697
        %v1607 = vsel %vm633, %v1605, 0.0
        %1608 = vadd.xlane.f32.xlu0 %v1607
        %v1609 = vpop.xlane.xlu0 %1608
        %v1610 = vsel %vm633, %v1606, 0.0
        %1611 = vadd.xlane.f32.xlu0 %v1610
        %v1612 = vpop.xlane.xlu0 %1611
        %v1613 = vadd.f32 %v1609, 1e-06
        %v1614 = vadd.f32 %v1612, 1e-06
        %v1615 = vadd.f32 %v1605, 6.25e-08
        %v1616 = vadd.f32 %v1606, 6.25e-08
        %v1617 = vrcp.pop %v1613
        %v1618 = vrcp.pop %v1614
        %v1619 = vmul.f32 %v1615, %v1617
        %v1620 = vmul.f32 %v1616, %v1618
        %v1621 = vpack.c.bf16 %v1620, %v1619
        %1622 = vrot.lane.b32.xlu0 %v632, 48
        %v1623 = vpop.permute.xlu0 %1622
        %v1626 = vsel %vm633, %v1621, 0
        %1628 = vmatprep.subr.bf16.mxu0 0
        %1629 = vmatpush1.bf16.msra.mxu0 %v1623
        %1630 = vmatprep.subr.bf16.mxu0 0
        %1631 = vmatpush1.bf16.msra.mxu0 0
        %1632 = vmatprep.subr.bf16.mxu0 0
        %1633 = vmatpush1.bf16.msra.mxu0 0
        %1634 = vmatprep.subr.bf16.mxu0 0
        %1635 = vmatpush1.bf16.msra.mxu0 0
        %1636 = vmatprep.subr.bf16.mxu0 0
        %1637 = vmatpush1.bf16.msra.mxu0 0
        %1638 = vmatprep.subr.bf16.mxu0 0
        %1639 = vmatpush1.bf16.msra.mxu0 0
        %1640 = vmatprep.subr.bf16.mxu0 0
        %1641 = vmatpush1.bf16.msra.mxu0 0
        %1642 = vmatprep.subr.bf16.mxu0 0
        %1643 = vmatpush1.bf16.msra.mxu0 0
        %1644 = vmatprep.subr.bf16.mxu0 0
        %1645 = vmatpush1.bf16.msra.mxu0 0
        %1646 = vmatprep.subr.bf16.mxu0 0
        %1647 = vmatpush1.bf16.msra.mxu0 0
        %1648 = vmatprep.subr.bf16.mxu0 0
        %1649 = vmatpush1.bf16.msra.mxu0 0
        %1650 = vmatprep.subr.bf16.mxu0 0
        %1651 = vmatpush1.bf16.msra.mxu0 0
        %1652 = vmatprep.subr.bf16.mxu0 0
        %1653 = vmatpush1.bf16.msra.mxu0 0
        %1654 = vmatprep.subr.bf16.mxu0 0
        %1655 = vmatpush1.bf16.msra.mxu0 0
        %1656 = vmatprep.subr.bf16.mxu0 0
        %1657 = vmatpush1.bf16.msra.mxu0 0
        %1658 = vmatprep.subr.bf16.mxu0 0
        %1659 = vmatpush1.bf16.msra.mxu0 0
        %1660 = vmatprep.mubr.bf16.mxu0 0
        %1661 = vmatmul.mubr.bf16.gmra.mrb[0].mxu0 %v1626
        %v1662 = vpop.f32.mrb[0].mxu0
        %v1663 = vadd.f32 0.0, %v1662
        %v1664 = vpop.f32.mrb[0].mxu0
        %v1665 = vpop.f32.mrb[0].mxu0
        %v1666 = vadd.f32 0.0, %v1665
        %v1667 = vpop.f32.mrb[0].mxu0
        %1668 = vdwg.mxu0
        %v1669 = vpack.c.bf16 %v1666, %v1663
        %v1670 = vld [vmem:[#allocation10 + $0x28] sm:$0xf]
        %v1671 = vld [vmem:[#allocation10 + $0x2c] sm:$0xf]
        %v1674 = vunpack.c.l.b16 %v1670
        %v1675 = vunpack.c.l.b16 %v1671
        %v1676 = vpack.c.b16 %v1675, %v1674
        %v1679 = vsel %vm633, %v1669, 0
        %1681 = vmatprep.subr.bf16.mxu0 0
        %1682 = vmatpush1.bf16.msra.mxu0 %v1676
        %1683 = vmatprep.subr.bf16.mxu0 0
        %1684 = vmatpush1.bf16.msra.mxu0 0
        %1685 = vmatprep.subr.bf16.mxu0 0
        %1686 = vmatpush1.bf16.msra.mxu0 0
        %1687 = vmatprep.subr.bf16.mxu0 0
        %1688 = vmatpush1.bf16.msra.mxu0 0
        %1689 = vmatprep.subr.bf16.mxu0 0
        %1690 = vmatpush1.bf16.msra.mxu0 0
        %1691 = vmatprep.subr.bf16.mxu0 0
        %1692 = vmatpush1.bf16.msra.mxu0 0
        %1693 = vmatprep.subr.bf16.mxu0 0
        %1694 = vmatpush1.bf16.msra.mxu0 0
        %1695 = vmatprep.subr.bf16.mxu0 0
        %1696 = vmatpush1.bf16.msra.mxu0 0
        %1697 = vmatprep.subr.bf16.mxu0 0
        %1698 = vmatpush1.bf16.msra.mxu0 0
        %1699 = vmatprep.subr.bf16.mxu0 0
        %1700 = vmatpush1.bf16.msra.mxu0 0
        %1701 = vmatprep.subr.bf16.mxu0 0
        %1702 = vmatpush1.bf16.msra.mxu0 0
        %1703 = vmatprep.subr.bf16.mxu0 0
        %1704 = vmatpush1.bf16.msra.mxu0 0
        %1705 = vmatprep.subr.bf16.mxu0 0
        %1706 = vmatpush1.bf16.msra.mxu0 0
        %1707 = vmatprep.subr.bf16.mxu0 0
        %1708 = vmatpush1.bf16.msra.mxu0 0
        %1709 = vmatprep.subr.bf16.mxu0 0
        %1710 = vmatpush1.bf16.msra.mxu0 0
        %1711 = vmatprep.subr.bf16.mxu0 0
        %1712 = vmatpush1.bf16.msra.mxu0 0
        %1713 = vmatprep.mubr.bf16.mxu0 0
        %1714 = vmatmul.mubr.bf16.gmra.mrb[0].mxu0 %v1679
        %v1715 = vpop.f32.mrb[0].mxu0
        %v1716 = vadd.f32 0.0, %v1715
        %v1717 = vpop.f32.mrb[0].mxu0
        %v1718 = vpop.f32.mrb[0].mxu0
        %v1719 = vadd.f32 0.0, %v1718
        %v1720 = vpop.f32.mrb[0].mxu0
        %1721 = vdwg.mxu0
        %v1722 = vadd.f32 %v1540, %v1716
        %v1723 = vadd.f32 %v1541, %v1719
        %1724 = vrot.lane.b32.xlu0 %v485, 32
        %v1725 = vpop.permute.xlu0 %1724
        %1726 = vrot.lane.b32.xlu0 %v631, 32
        %v1727 = vpop.permute.xlu0 %1726
        %v1729 = vsel %vm633, %v1725, 0
        %v1732 = vsel %vm633, %v1727, 0
        %1734 = vmatprep.subr.bf16.mxu0 0
        %1735 = vmatpush1.bf16.xpose.msra.mxu0 %v1732
        %1736 = vmatprep.subr.bf16.mxu0 0
        %1737 = vmatpush1.bf16.xpose.msra.mxu0 0
        %1738 = vmatprep.subr.bf16.mxu0 0
        %1739 = vmatpush1.bf16.xpose.msra.mxu0 0
        %1740 = vmatprep.subr.bf16.mxu0 0
        %1741 = vmatpush1.bf16.xpose.msra.mxu0 0
        %1742 = vmatprep.subr.bf16.mxu0 0
        %1743 = vmatpush1.bf16.xpose.msra.mxu0 0
        %1744 = vmatprep.subr.bf16.mxu0 0
        %1745 = vmatpush1.bf16.xpose.msra.mxu0 0
        %1746 = vmatprep.subr.bf16.mxu0 0
        %1747 = vmatpush1.bf16.xpose.msra.mxu0 0
        %1748 = vmatprep.subr.bf16.mxu0 0
        %1749 = vmatpush1.bf16.xpose.msra.mxu0 0
        %1750 = vmatprep.subr.bf16.mxu0 0
        %1751 = vmatpush1.bf16.xpose.msra.mxu0 0
        %1752 = vmatprep.subr.bf16.mxu0 0
        %1753 = vmatpush1.bf16.xpose.msra.mxu0 0
        %1754 = vmatprep.subr.bf16.mxu0 0
        %1755 = vmatpush1.bf16.xpose.msra.mxu0 0
        %1756 = vmatprep.subr.bf16.mxu0 0
        %1757 = vmatpush1.bf16.xpose.msra.mxu0 0
        %1758 = vmatprep.subr.bf16.mxu0 0
        %1759 = vmatpush1.bf16.xpose.msra.mxu0 0
        %1760 = vmatprep.subr.bf16.mxu0 0
        %1761 = vmatpush1.bf16.xpose.msra.mxu0 0
        %1762 = vmatprep.subr.bf16.mxu0 0
        %1763 = vmatpush1.bf16.xpose.msra.mxu0 0
        %1764 = vmatprep.subr.bf16.mxu0 0
        %1765 = vmatpush1.bf16.xpose.msra.mxu0 0
        %1766 = vmatprep.mubr.bf16.mxu0 0
        %1767 = vmatmul.mubr.bf16.gmra.mrb[0].mxu0 %v1729
        %v1768 = vpop.f32.mrb[0].mxu0
        %v1769 = vadd.f32 0.0, %v1768
        %v1770 = vpop.f32.mrb[0].mxu0
        %v1771 = vpop.f32.mrb[0].mxu0
        %v1772 = vadd.f32 0.0, %v1771
        %v1773 = vpop.f32.mrb[0].mxu0
        %1774 = vdwg.mxu0
        %v1775 = vsel %vm633, %v1769, -inf
        %1776 = vmax.xlane.f32.xlu0 %v1775
        %v1777 = vpop.xlane.xlu0 %1776
        %v1778 = vsel %vm633, %v1772, -inf
        %1779 = vmax.xlane.f32.xlu0 %v1778
        %v1780 = vpop.xlane.xlu0 %1779
        %v1781 = vsub.f32 %v1769, %v1777
        %v1782 = vsub.f32 %v1772, %v1780
        %v1783 = vmul.f32 %v1781, 1.442695
        %v1784 = vpow.pop %v1783
        %v1785 = vmul.f32 %v1782, 1.442695
        %v1786 = vpow.pop %v1785
        %v1787 = vmul.f32 %v1784, %v697
        %v1788 = vmul.f32 %v1786, %v697
        %v1789 = vsel %vm633, %v1787, 0.0
        %1790 = vadd.xlane.f32.xlu0 %v1789
        %v1791 = vpop.xlane.xlu0 %1790
        %v1792 = vsel %vm633, %v1788, 0.0
        %1793 = vadd.xlane.f32.xlu0 %v1792
        %v1794 = vpop.xlane.xlu0 %1793
        %v1795 = vadd.f32 %v1791, 1e-06
        %v1796 = vadd.f32 %v1794, 1e-06
        %v1797 = vadd.f32 %v1787, 6.25e-08
        %v1798 = vadd.f32 %v1788, 6.25e-08
        %v1799 = vrcp.pop %v1795
        %v1800 = vrcp.pop %v1796
        %v1801 = vmul.f32 %v1797, %v1799
        %v1802 = vmul.f32 %v1798, %v1800
        %v1803 = vpack.c.bf16 %v1802, %v1801
        %1804 = vrot.lane.b32.xlu0 %v632, 32
        %v1805 = vpop.permute.xlu0 %1804
        %v1808 = vsel %vm633, %v1803, 0
        %1810 = vmatprep.subr.bf16.mxu0 0
        %1811 = vmatpush1.bf16.msra.mxu0 %v1805
        %1812 = vmatprep.subr.bf16.mxu0 0
        %1813 = vmatpush1.bf16.msra.mxu0 0
        %1814 = vmatprep.subr.bf16.mxu0 0
        %1815 = vmatpush1.bf16.msra.mxu0 0
        %1816 = vmatprep.subr.bf16.mxu0 0
        %1817 = vmatpush1.bf16.msra.mxu0 0
        %1818 = vmatprep.subr.bf16.mxu0 0
        %1819 = vmatpush1.bf16.msra.mxu0 0
        %1820 = vmatprep.subr.bf16.mxu0 0
        %1821 = vmatpush1.bf16.msra.mxu0 0
        %1822 = vmatprep.subr.bf16.mxu0 0
        %1823 = vmatpush1.bf16.msra.mxu0 0
        %1824 = vmatprep.subr.bf16.mxu0 0
        %1825 = vmatpush1.bf16.msra.mxu0 0
        %1826 = vmatprep.subr.bf16.mxu0 0
        %1827 = vmatpush1.bf16.msra.mxu0 0
        %1828 = vmatprep.subr.bf16.mxu0 0
        %1829 = vmatpush1.bf16.msra.mxu0 0
        %1830 = vmatprep.subr.bf16.mxu0 0
        %1831 = vmatpush1.bf16.msra.mxu0 0
        %1832 = vmatprep.subr.bf16.mxu0 0
        %1833 = vmatpush1.bf16.msra.mxu0 0
        %1834 = vmatprep.subr.bf16.mxu0 0
        %1835 = vmatpush1.bf16.msra.mxu0 0
        %1836 = vmatprep.subr.bf16.mxu0 0
        %1837 = vmatpush1.bf16.msra.mxu0 0
        %1838 = vmatprep.subr.bf16.mxu0 0
        %1839 = vmatpush1.bf16.msra.mxu0 0
        %1840 = vmatprep.subr.bf16.mxu0 0
        %1841 = vmatpush1.bf16.msra.mxu0 0
        %1842 = vmatprep.mubr.bf16.mxu0 0
        %1843 = vmatmul.mubr.bf16.gmra.mrb[0].mxu0 %v1808
        %v1844 = vpop.f32.mrb[0].mxu0
        %v1845 = vadd.f32 0.0, %v1844
        %v1846 = vpop.f32.mrb[0].mxu0
        %v1847 = vpop.f32.mrb[0].mxu0
        %v1848 = vadd.f32 0.0, %v1847
        %v1849 = vpop.f32.mrb[0].mxu0
        %1850 = vdwg.mxu0
        %v1851 = vpack.c.bf16 %v1848, %v1845
        %v1852 = vld [vmem:[#allocation10 + $0x30] sm:$0xf]
        %v1853 = vld [vmem:[#allocation10 + $0x34] sm:$0xf]
        %v1856 = vunpack.c.l.b16 %v1852
        %v1857 = vunpack.c.l.b16 %v1853
        %v1858 = vpack.c.b16 %v1857, %v1856
        %v1861 = vsel %vm633, %v1851, 0
        %1863 = vmatprep.subr.bf16.mxu0 0
        %1864 = vmatpush1.bf16.msra.mxu0 %v1858
        %1865 = vmatprep.subr.bf16.mxu0 0
        %1866 = vmatpush1.bf16.msra.mxu0 0
        %1867 = vmatprep.subr.bf16.mxu0 0
        %1868 = vmatpush1.bf16.msra.mxu0 0
        %1869 = vmatprep.subr.bf16.mxu0 0
        %1870 = vmatpush1.bf16.msra.mxu0 0
        %1871 = vmatprep.subr.bf16.mxu0 0
        %1872 = vmatpush1.bf16.msra.mxu0 0
        %1873 = vmatprep.subr.bf16.mxu0 0
        %1874 = vmatpush1.bf16.msra.mxu0 0
        %1875 = vmatprep.subr.bf16.mxu0 0
        %1876 = vmatpush1.bf16.msra.mxu0 0
        %1877 = vmatprep.subr.bf16.mxu0 0
        %1878 = vmatpush1.bf16.msra.mxu0 0
        %1879 = vmatprep.subr.bf16.mxu0 0
        %1880 = vmatpush1.bf16.msra.mxu0 0
        %1881 = vmatprep.subr.bf16.mxu0 0
        %1882 = vmatpush1.bf16.msra.mxu0 0
        %1883 = vmatprep.subr.bf16.mxu0 0
        %1884 = vmatpush1.bf16.msra.mxu0 0
        %1885 = vmatprep.subr.bf16.mxu0 0
        %1886 = vmatpush1.bf16.msra.mxu0 0
        %1887 = vmatprep.subr.bf16.mxu0 0
        %1888 = vmatpush1.bf16.msra.mxu0 0
        %1889 = vmatprep.subr.bf16.mxu0 0
        %1890 = vmatpush1.bf16.msra.mxu0 0
        %1891 = vmatprep.subr.bf16.mxu0 0
        %1892 = vmatpush1.bf16.msra.mxu0 0
        %1893 = vmatprep.subr.bf16.mxu0 0
        %1894 = vmatpush1.bf16.msra.mxu0 0
        %1895 = vmatprep.mubr.bf16.mxu0 0
        %1896 = vmatmul.mubr.bf16.gmra.mrb[0].mxu0 %v1861
        %v1897 = vpop.f32.mrb[0].mxu0
        %v1898 = vadd.f32 0.0, %v1897
        %v1899 = vpop.f32.mrb[0].mxu0
        %v1900 = vpop.f32.mrb[0].mxu0
        %v1901 = vadd.f32 0.0, %v1900
        %v1902 = vpop.f32.mrb[0].mxu0
        %1903 = vdwg.mxu0
        %v1904 = vadd.f32 %v1722, %v1898
        %v1905 = vadd.f32 %v1723, %v1901
        %1906 = vrot.lane.b32.xlu0 %v485, 16
        %v1907 = vpop.permute.xlu0 %1906
        %1908 = vrot.lane.b32.xlu0 %v631, 16
        %v1909 = vpop.permute.xlu0 %1908
        %v1911 = vsel %vm633, %v1907, 0
        %v1914 = vsel %vm633, %v1909, 0
        %1916 = vmatprep.subr.bf16.mxu0 0
        %1917 = vmatpush1.bf16.xpose.msra.mxu0 %v1914
        %1918 = vmatprep.subr.bf16.mxu0 0
        %1919 = vmatpush1.bf16.xpose.msra.mxu0 0
        %1920 = vmatprep.subr.bf16.mxu0 0
        %1921 = vmatpush1.bf16.xpose.msra.mxu0 0
        %1922 = vmatprep.subr.bf16.mxu0 0
        %1923 = vmatpush1.bf16.xpose.msra.mxu0 0
        %1924 = vmatprep.subr.bf16.mxu0 0
        %1925 = vmatpush1.bf16.xpose.msra.mxu0 0
        %1926 = vmatprep.subr.bf16.mxu0 0
        %1927 = vmatpush1.bf16.xpose.msra.mxu0 0
        %1928 = vmatprep.subr.bf16.mxu0 0
        %1929 = vmatpush1.bf16.xpose.msra.mxu0 0
        %1930 = vmatprep.subr.bf16.mxu0 0
        %1931 = vmatpush1.bf16.xpose.msra.mxu0 0
        %1932 = vmatprep.subr.bf16.mxu0 0
        %1933 = vmatpush1.bf16.xpose.msra.mxu0 0
        %1934 = vmatprep.subr.bf16.mxu0 0
        %1935 = vmatpush1.bf16.xpose.msra.mxu0 0
        %1936 = vmatprep.subr.bf16.mxu0 0
        %1937 = vmatpush1.bf16.xpose.msra.mxu0 0
        %1938 = vmatprep.subr.bf16.mxu0 0
        %1939 = vmatpush1.bf16.xpose.msra.mxu0 0
        %1940 = vmatprep.subr.bf16.mxu0 0
        %1941 = vmatpush1.bf16.xpose.msra.mxu0 0
        %1942 = vmatprep.subr.bf16.mxu0 0
        %1943 = vmatpush1.bf16.xpose.msra.mxu0 0
        %1944 = vmatprep.subr.bf16.mxu0 0
        %1945 = vmatpush1.bf16.xpose.msra.mxu0 0
        %1946 = vmatprep.subr.bf16.mxu0 0
        %1947 = vmatpush1.bf16.xpose.msra.mxu0 0
        %1948 = vmatprep.mubr.bf16.mxu0 0
        %1949 = vmatmul.mubr.bf16.gmra.mrb[0].mxu0 %v1911
        %v1950 = vpop.f32.mrb[0].mxu0
        %v1951 = vadd.f32 0.0, %v1950
        %v1952 = vpop.f32.mrb[0].mxu0
        %v1953 = vpop.f32.mrb[0].mxu0
        %v1954 = vadd.f32 0.0, %v1953
        %v1955 = vpop.f32.mrb[0].mxu0
        %1956 = vdwg.mxu0
        %v1957 = vsel %vm633, %v1951, -inf
        %1958 = vmax.xlane.f32.xlu0 %v1957
        %v1959 = vpop.xlane.xlu0 %1958
        %v1960 = vsel %vm633, %v1954, -inf
        %1961 = vmax.xlane.f32.xlu0 %v1960
        %v1962 = vpop.xlane.xlu0 %1961
        %v1963 = vsub.f32 %v1951, %v1959
        %v1964 = vsub.f32 %v1954, %v1962
        %v1965 = vmul.f32 %v1963, 1.442695
        %v1966 = vpow.pop %v1965
        %v1967 = vmul.f32 %v1964, 1.442695
        %v1968 = vpow.pop %v1967
        %v1969 = vmul.f32 %v1966, %v697
        %v1970 = vmul.f32 %v1968, %v697
        %v1971 = vsel %vm633, %v1969, 0.0
        %1972 = vadd.xlane.f32.xlu0 %v1971
        %v1973 = vpop.xlane.xlu0 %1972
        %v1974 = vsel %vm633, %v1970, 0.0
        %1975 = vadd.xlane.f32.xlu0 %v1974
        %v1976 = vpop.xlane.xlu0 %1975
        %v1977 = vadd.f32 %v1973, 1e-06
        %v1978 = vadd.f32 %v1976, 1e-06
        %v1979 = vadd.f32 %v1969, 6.25e-08
        %v1980 = vadd.f32 %v1970, 6.25e-08
        %v1981 = vrcp.pop %v1977
        %v1982 = vrcp.pop %v1978
        %v1983 = vmul.f32 %v1979, %v1981
        %v1984 = vmul.f32 %v1980, %v1982
        %v1985 = vpack.c.bf16 %v1984, %v1983
        %1986 = vrot.lane.b32.xlu0 %v632, 16
        %v1987 = vpop.permute.xlu0 %1986
        %v1990 = vsel %vm633, %v1985, 0
        %1992 = vmatprep.subr.bf16.mxu0 0
        %1993 = vmatpush1.bf16.msra.mxu0 %v1987
        %1994 = vmatprep.subr.bf16.mxu0 0
        %1995 = vmatpush1.bf16.msra.mxu0 0
        %1996 = vmatprep.subr.bf16.mxu0 0
        %1997 = vmatpush1.bf16.msra.mxu0 0
        %1998 = vmatprep.subr.bf16.mxu0 0
        %1999 = vmatpush1.bf16.msra.mxu0 0
        %2000 = vmatprep.subr.bf16.mxu0 0
        %2001 = vmatpush1.bf16.msra.mxu0 0
        %2002 = vmatprep.subr.bf16.mxu0 0
        %2003 = vmatpush1.bf16.msra.mxu0 0
        %2004 = vmatprep.subr.bf16.mxu0 0
        %2005 = vmatpush1.bf16.msra.mxu0 0
        %2006 = vmatprep.subr.bf16.mxu0 0
        %2007 = vmatpush1.bf16.msra.mxu0 0
        %2008 = vmatprep.subr.bf16.mxu0 0
        %2009 = vmatpush1.bf16.msra.mxu0 0
        %2010 = vmatprep.subr.bf16.mxu0 0
        %2011 = vmatpush1.bf16.msra.mxu0 0
        %2012 = vmatprep.subr.bf16.mxu0 0
        %2013 = vmatpush1.bf16.msra.mxu0 0
        %2014 = vmatprep.subr.bf16.mxu0 0
        %2015 = vmatpush1.bf16.msra.mxu0 0
        %2016 = vmatprep.subr.bf16.mxu0 0
        %2017 = vmatpush1.bf16.msra.mxu0 0
        %2018 = vmatprep.subr.bf16.mxu0 0
        %2019 = vmatpush1.bf16.msra.mxu0 0
        %2020 = vmatprep.subr.bf16.mxu0 0
        %2021 = vmatpush1.bf16.msra.mxu0 0
        %2022 = vmatprep.subr.bf16.mxu0 0
        %2023 = vmatpush1.bf16.msra.mxu0 0
        %2024 = vmatprep.mubr.bf16.mxu0 0
        %2025 = vmatmul.mubr.bf16.gmra.mrb[0].mxu0 %v1990
        %v2026 = vpop.f32.mrb[0].mxu0
        %v2027 = vadd.f32 0.0, %v2026
        %v2028 = vpop.f32.mrb[0].mxu0
        %v2029 = vpop.f32.mrb[0].mxu0
        %v2030 = vadd.f32 0.0, %v2029
        %v2031 = vpop.f32.mrb[0].mxu0
        %2032 = vdwg.mxu0
        %v2033 = vpack.c.bf16 %v2030, %v2027
        %v2034 = vld [vmem:[#allocation10 + $0x38] sm:$0xf]
        %v2035 = vld [vmem:[#allocation10 + $0x3c] sm:$0xf]
        %v2038 = vunpack.c.l.b16 %v2034
        %v2039 = vunpack.c.l.b16 %v2035
        %v2040 = vpack.c.b16 %v2039, %v2038
        %v2043 = vsel %vm633, %v2033, 0
        %2045 = vmatprep.subr.bf16.mxu0 0
        %2046 = vmatpush1.bf16.msra.mxu0 %v2040
        %2047 = vmatprep.subr.bf16.mxu0 0
        %2048 = vmatpush1.bf16.msra.mxu0 0
        %2049 = vmatprep.subr.bf16.mxu0 0
        %2050 = vmatpush1.bf16.msra.mxu0 0
        %2051 = vmatprep.subr.bf16.mxu0 0
        %2052 = vmatpush1.bf16.msra.mxu0 0
        %2053 = vmatprep.subr.bf16.mxu0 0
        %2054 = vmatpush1.bf16.msra.mxu0 0
        %2055 = vmatprep.subr.bf16.mxu0 0
        %2056 = vmatpush1.bf16.msra.mxu0 0
        %2057 = vmatprep.subr.bf16.mxu0 0
        %2058 = vmatpush1.bf16.msra.mxu0 0
        %2059 = vmatprep.subr.bf16.mxu0 0
        %2060 = vmatpush1.bf16.msra.mxu0 0
        %2061 = vmatprep.subr.bf16.mxu0 0
        %2062 = vmatpush1.bf16.msra.mxu0 0
        %2063 = vmatprep.subr.bf16.mxu0 0
        %2064 = vmatpush1.bf16.msra.mxu0 0
        %2065 = vmatprep.subr.bf16.mxu0 0
        %2066 = vmatpush1.bf16.msra.mxu0 0
        %2067 = vmatprep.subr.bf16.mxu0 0
        %2068 = vmatpush1.bf16.msra.mxu0 0
        %2069 = vmatprep.subr.bf16.mxu0 0
        %2070 = vmatpush1.bf16.msra.mxu0 0
        %2071 = vmatprep.subr.bf16.mxu0 0
        %2072 = vmatpush1.bf16.msra.mxu0 0
        %2073 = vmatprep.subr.bf16.mxu0 0
        %2074 = vmatpush1.bf16.msra.mxu0 0
        %2075 = vmatprep.subr.bf16.mxu0 0
        %2076 = vmatpush1.bf16.msra.mxu0 0
        %2077 = vmatprep.mubr.bf16.mxu0 0
        %2078 = vmatmul.mubr.bf16.gmra.mrb[0].mxu0 %v2043
        %v2079 = vpop.f32.mrb[0].mxu0
        %v2080 = vadd.f32 0.0, %v2079
        %v2081 = vpop.f32.mrb[0].mxu0
        %v2082 = vpop.f32.mrb[0].mxu0
        %v2083 = vadd.f32 0.0, %v2082
        %v2084 = vpop.f32.mrb[0].mxu0
        %2085 = vdwg.mxu0
        %v2086 = vadd.f32 %v1904, %v2080
        %v2087 = vadd.f32 %v1905, %v2083
        %2088 = vst [vmem:[%s363] sm:$0xff] %v2086
        %2089 = vst [vmem:[%s363 + $0x8] sm:$0xff] %v2087
        %s2090 = sand.u32 %s176, 1
        %s2091 = scalar_lea.sflag [#allocation4], %s2090
        %s2092 = sand.u32 %s176, 1
        %s2093 = smul.addr %s2092, 16
        %s2094 = scalar_lea.vmem [#allocation11], %s2093
        // Predicated region
        $region65: #{tpu_custom_call.1} parent=43 // pred_check
          %p2095 = pneg %p186
        $region66: #{tpu_custom_call.1} parent=43 // pred_check_branch
          %2097 = sbr.rel (%p2095) target = $region68
        $region67: #{tpu_custom_call.1} parent=43 // pred_region
          %s2099 = ssub.s32 256, 256
          %2100 = vsyncadd %s2091, %s2099
          %s2101 = smul.addr %s27, 2
          %s2102 = smul.addr %s2101, 128
          %s2103 = scalar_lea.hbm %s6, %s2102
          %s2104 = sshll.u32 %s2094, 4
          %s2105 = int_to_ptr.vmem [resolvable:$true] %s2104
          %2110 = dma.vmem_to_hbm [thread:$0]  %s2105, 256, %s2103, %s2091, 128, 128, 8
        $region68: #{tpu_custom_call.1} parent=43 // pred_fallthru
          _
      $region44: #{tpu_custom_call.1} parent=5 // pred_fallthru
        _
      %p2111 = scmp.le.s32.totalorder 2, %s22
      // Predicated region
      $region69: #{tpu_custom_call.1} parent=5 // pred_check
        %p2112 = pneg %p2111
      $region70: #{tpu_custom_call.1} parent=5 // pred_check_branch
        %2114 = sbr.rel (%p2112) target = $region72
      $region71: #{tpu_custom_call.1} parent=5 // pred_region
        %s2115 = ssub.s32 %s22, 2
        // Predicated region
        $region73: #{tpu_custom_call.1} parent=71 // pred_check
          %p2116 = pneg %p192
        $region74: #{tpu_custom_call.1} parent=71 // pred_check_branch
          %2118 = sbr.rel (%p2116) target = $region76
        $region75: #{tpu_custom_call.1} parent=71 // pred_region
          %s2119 = sand.u32 %s177, 1
          %s2120 = scalar_lea.sflag [#allocation4], %s2119
          %s2121 = sand.u32 %s177, 1
          %s2122 = smul.addr %s2121, 16
          %s2123 = scalar_lea.vmem [#allocation11], %s2122
          %2124 = dma.done %s2120, 256
        $region76: #{tpu_custom_call.1} parent=71 // pred_fallthru
          _
      $region72: #{tpu_custom_call.1} parent=5 // pred_fallthru
        _
    $region6: #{tpu_custom_call.1} parent=1 // loop_footer
      %s26 = sadd.s32 1, %s22
    $region7: #{tpu_custom_call.1} parent=1 // loop_footer_branch
      %21 = sbr.rel target = $region3
    $region8: #{tpu_custom_call.1} parent=1 // loop_exit
      _
    %2125 = vsyncpa [#allocation3], 1
    %s2126 = scalar_lea.sflag [#allocation3], 1
    %2127 = vsyncpa %s2126, 1
    %2128 = vsyncpa [#allocation6], 1
    %s2129 = scalar_lea.sflag [#allocation6], 1
    %2130 = vsyncpa %s2129, 1
    %2131 = vsyncpa [#allocation9], 1
    %2132 = vsyncpa [#allocation4], 1
    %s2133 = scalar_lea.sflag [#allocation4], 1
    %2134 = vsyncpa %s2133, 1

</llo_original>
